<compile_context>
chip_gen: v6e
topology: v6e:2x2x1
jax: 0.10.0
libtpu: 0.0.40
codegen_flags: <defaults>
</compile_context>

<pallas_src>
import functools

import jax
import jax.numpy as jnp
from jax import lax
from jax.experimental import pallas as pl
from jax.experimental.pallas import tpu as pltpu


def _round_up(x, m):
    return ((x + m - 1) // m) * m


# ------------------------------------------------------------------
# Pallas kernels
# ------------------------------------------------------------------

def _fusion_kernel(a_ref, t_ref, p_ref,
                   wa_ref, wt_ref, wp_ref, wat_ref, watp_ref, b_ref,
                   out_ref):
    """Folded fusion1/2/3 + final fusion linear.

    out = a@Wa + t@Wt + p@Wp + (a*t)@Wat + (a*t*p)@Watp + b
    Elementwise feature math in f32 (VPU), MXU operands bf16, f32 accumulate.
    """
    a = a_ref[...]
    t = t_ref[...]
    p = p_ref[...]
    at = a * t
    atp = at * p

    def mm(x, w_ref):
        return jnp.dot(x.astype(jnp.bfloat16), w_ref[...],
                       preferred_element_type=jnp.float32)

    out_ref[...] = (mm(a, wa_ref) + mm(t, wt_ref) + mm(p, wp_ref)
                    + mm(at, wat_ref) + mm(atp, watp_ref) + b_ref[...])


def _lm_ce_kernel(x_ref, wd_ref, bd_ref, wlm_ref, lbl_ref, nll_ref,
                  h_scr, m_scr, l_scr, c_scr, *, v_real, tv):
    """Fused tanh(dense(x)) -> lm_head -> masked-CE NLL, tiled over vocab.

    Grid: (rows "parallel", vocab "arbitrary").  Hidden is computed once per
    row tile (j == 0) and kept in bf16 VMEM scratch; an online max / lse /
    correct-logit accumulator runs across vocab tiles so the [rows, V] logits
    never hit HBM.  Per-row NLL is written on the last vocab tile.
    """
    j = pl.program_id(1)

    @pl.when(j == 0)
    def _():
        h = jnp.tanh(jnp.dot(x_ref[...].astype(jnp.bfloat16), wd_ref[...],
                             preferred_element_type=jnp.float32) + bd_ref[...])
        h_scr[...] = h.astype(jnp.bfloat16)
        m_scr[...] = jnp.full_like(m_scr, -1e30)
        l_scr[...] = jnp.zeros_like(l_scr)
        c_scr[...] = jnp.zeros_like(c_scr)

    # logits tile [TM, TV]: contract on last dims (wlm stored [V, H], no .T).
    s = lax.dot_general(h_scr[...], wlm_ref[...],
                        (((1,), (1,)), ((), ())),
                        preferred_element_type=jnp.float32)
    tm = s.shape[0]
    col = j * tv + lax.broadcasted_iota(jnp.int32, (tm, tv), 1)
    s = jnp.where(col < v_real, s, -1e30)          # mask padded vocab columns

    labels = lbl_ref[...]                          # [TM, 1] int32
    onehot = (col == labels).astype(jnp.float32)   # label == -1 never matches
    c_scr[...] += jnp.sum(s * onehot, axis=-1, keepdims=True)

    m_prev = m_scr[...]
    m_new = jnp.maximum(m_prev, jnp.max(s, axis=-1, keepdims=True))
    l_scr[...] = (l_scr[...] * jnp.exp(m_prev - m_new)
                  + jnp.sum(jnp.exp(s - m_new), axis=-1, keepdims=True))
    m_scr[...] = m_new

    @pl.when(j == pl.num_programs(1) - 1)
    def _():
        nll_ref[...] = (m_scr[...] + jnp.log(l_scr[...])) - c_scr[...]


# ------------------------------------------------------------------
# Pallas wrappers
# ------------------------------------------------------------------

def fold_fusion_weights(params):
    """Fold fusion1/2/3 + fusion into 5 effective HxH weights + 1 bias.

    Exact algebraic rewrite (all four linears are affine, no nonlinearity).
    """
    H = params["dense_w"].shape[0]
    w1, w2, w3, wf = (params["fusion1_w"], params["fusion2_w"],
                      params["fusion3_w"], params["fusion_w"])
    b1, b2, b3, bf = (params["fusion1_b"], params["fusion2_b"],
                      params["fusion3_b"], params["fusion_b"])
    wf1, wf2, wf3 = wf[:H], wf[H:2 * H], wf[2 * H:]
    wa = (w1[:H] @ wf1
          + (w2[:H] + w2[H:2 * H] + w2[2 * H:]) @ wf2
          + w3[:H] @ wf3)
    wt = w1[H:2 * H] @ wf1 - (w2[H:2 * H] + w2[2 * H:]) @ wf2
    wp = w1[2 * H:] @ wf1 - w2[2 * H:] @ wf2
    wat = w3[H:2 * H] @ wf3
    watp = w3[2 * H:] @ wf3
    bias = b1 @ wf1 + b2 @ wf2 + b3 @ wf3 + bf
    return wa, wt, wp, wat, watp, bias


def fusion_pallas(a, t, p, folded, *, tm_target=256):
    """Row-tiled fused fusion stack.  a/t/p: [N, H] f32 -> [N, H] f32."""
    N, H = a.shape
    wa, wt, wp, wat, watp, bias = folded

    tm = max(16, min(tm_target, _round_up(N, 16)))
    n_pad = _round_up(N, tm)
    if n_pad != N:
        pad = ((0, n_pad - N), (0, 0))
        a = jnp.pad(a, pad)
        t = jnp.pad(t, pad)
        p = jnp.pad(p, pad)

    w_bf = [w.astype(jnp.bfloat16) for w in (wa, wt, wp, wat, watp)]
    b2d = bias[None, :].astype(jnp.float32)

    row_spec = pl.BlockSpec((tm, H), lambda i: (i, 0))
    w_spec = pl.BlockSpec((H, H), lambda i: (0, 0))
    b_spec = pl.BlockSpec((1, H), lambda i: (0, 0))

    out = pl.pallas_call(
        _fusion_kernel,
        out_shape=jax.ShapeDtypeStruct((n_pad, H), jnp.float32),
        grid=(n_pad // tm,),
        in_specs=[row_spec, row_spec, row_spec,
                  w_spec, w_spec, w_spec, w_spec, w_spec, b_spec],
        out_specs=row_spec,
        compiler_params=pltpu.CompilerParams(
            dimension_semantics=("parallel",),
            vmem_limit_bytes=48 * 1024 * 1024),
    )(a, t, p, *w_bf, b2d)
    return out[:N]


def lm_ce_pallas(x, labels, word_emb, dense_w, dense_b,
                 *, tm_target=256, tv_target=2048):
    """Fused dense+tanh + lm_head + CE.  x: [M, H], labels: [M] -> nll [M]."""
    M, H = x.shape
    V = word_emb.shape[0]

    tm = max(16, min(tm_target, _round_up(M, 16)))
    m_pad = _round_up(M, tm)
    tv = min(tv_target, _round_up(V, 128))          # multiple of 128
    v_pad = _round_up(V, tv)

    if m_pad != M:
        x = jnp.pad(x, ((0, m_pad - M), (0, 0)))
        labels = jnp.pad(labels, ((0, m_pad - M),), constant_values=-1)

    wlm = word_emb.astype(jnp.bfloat16)             # tied lm_head, [V, H]
    if v_pad != V:
        wlm = jnp.pad(wlm, ((0, v_pad - V), (0, 0)))
    wd = dense_w.astype(jnp.bfloat16)
    bd = dense_b[None, :].astype(jnp.float32)
    lbl = labels[:, None].astype(jnp.int32)

    kernel = functools.partial(_lm_ce_kernel, v_real=V, tv=tv)
    nll = pl.pallas_call(
        kernel,
        out_shape=jax.ShapeDtypeStruct((m_pad, 1), jnp.float32),
        grid=(m_pad // tm, v_pad // tv),
        in_specs=[
            pl.BlockSpec((tm, H), lambda i, j: (i, 0)),   # x rows
            pl.BlockSpec((H, H), lambda i, j: (0, 0)),    # dense W (bf16)
            pl.BlockSpec((1, H), lambda i, j: (0, 0)),    # dense b
            pl.BlockSpec((tv, H), lambda i, j: (j, 0)),   # lm_head tile (bf16)
            pl.BlockSpec((tm, 1), lambda i, j: (i, 0)),   # labels
        ],
        out_specs=pl.BlockSpec((tm, 1), lambda i, j: (i, 0)),
        scratch_shapes=[
            pltpu.VMEM((tm, H), jnp.bfloat16),            # hidden
            pltpu.VMEM((tm, 1), jnp.float32),             # running max
            pltpu.VMEM((tm, 1), jnp.float32),             # running sum-exp
            pltpu.VMEM((tm, 1), jnp.float32),             # correct logit
        ],
        compiler_params=pltpu.CompilerParams(
            dimension_semantics=("parallel", "arbitrary"),
            vmem_limit_bytes=48 * 1024 * 1024),
    )(x, wd, bd, wlm, lbl)
    return nll[:M, 0]


# ------------------------------------------------------------------
# Synthetic encoder / decoder stand-ins (plain JAX glue)
# ------------------------------------------------------------------
# TODO(synk): encoder/decoder are injected external modules (RoBERTa /
# nn.TransformerDecoder) in the PyTorch code; minimal deterministic synthetic
# stand-ins are used here.

def encoder_embeddings(params, ids):
    return params["word_emb"][ids]                 # [B, L, H]


def encoder_forward(params, ids, mask):
    x = encoder_embeddings(params, ids)
    x = jnp.tanh(x @ params["enc_w"] + params["enc_b"])
    return x                                       # [B, L, H]  (= outputs[0])


def decoder_forward(params, tgt, memory, tgt_mask, mem_pad_mask):
    """Single-layer, single-head transformer decoder stand-in.

    tgt: [T, B, H], memory: [S, B, H], tgt_mask additive [T, T],
    mem_pad_mask [B, S] bool (True = padded / masked out).
    """
    H = tgt.shape[-1]
    scale = 1.0 / jnp.sqrt(jnp.float32(H))

    q = tgt @ params["wq"]
    k = tgt @ params["wk"]
    v = tgt @ params["wv"]
    s = jnp.einsum("tbh,ubh->btu", q, k) * scale + tgt_mask[None]
    a = jax.nn.softmax(s, axis=-1)
    x = tgt + jnp.einsum("btu,ubh->tbh", a, v) @ params["wo"]

    q2 = x @ params["cq"]
    k2 = memory @ params["ck"]
    v2 = memory @ params["cv"]
    s2 = jnp.einsum("tbh,sbh->bts", q2, k2) * scale
    s2 = jnp.where(mem_pad_mask[:, None, :], -1e9, s2)
    a2 = jax.nn.softmax(s2, axis=-1)
    x = x + jnp.einsum("bts,sbh->tbh", a2, v2) @ params["co"]

    x = x + jax.nn.relu(x @ params["ff1"] + params["ffb1"]) @ params["ff2"] + params["ffb2"]
    return x                                       # [T, B, H]


# ------------------------------------------------------------------
# Seq2Seq forward (training branch: target_ids provided)
# ------------------------------------------------------------------

@jax.jit
def seq2seq_forward(params, src_ant_ids, src_ant_mask, so_title_ids,
                    so_title_mask, so_api_ids, so_api_mask,
                    target_ids, target_mask):
    B, S = src_ant_ids.shape
    T = target_ids.shape[1]
    H = params["word_emb"].shape[1]

    # Three encoder passes; permute [B, S, H] -> [S, B, H].
    a = jnp.transpose(encoder_forward(params, src_ant_ids, src_ant_mask), (1, 0, 2))
    t = jnp.transpose(encoder_forward(params, so_title_ids, so_title_mask), (1, 0, 2))
    p = jnp.transpose(encoder_forward(params, so_api_ids, so_api_mask), (1, 0, 2))
    # l2_norm=False (default) -> no normalization.

    # Fusion hot path in Pallas (rows = S*B, lanes = H), folded weights.
    folded = fold_fusion_weights(params)
    enc_flat = fusion_pallas(a.reshape(-1, H), t.reshape(-1, H),
                             p.reshape(-1, H), folded)
    encoder_output = enc_flat.reshape(S, B, H)
    # nn.Dropout in eval mode -> identity (deterministic reproduction).

    # Decoder with causal additive mask and memory key padding mask.
    tril = jnp.tril(jnp.ones((T, T), jnp.float32))
    attn_mask = -10000.0 * (1.0 - tril)
    tgt_emb = jnp.transpose(encoder_embeddings(params, target_ids), (1, 0, 2))  # [T,B,H]
    mem_pad = (1 - src_ant_mask).astype(bool)
    out = decoder_forward(params, tgt_emb, encoder_output, attn_mask, mem_pad)  # [T,B,H]

    # Fused tanh(dense(.)) + lm_head + masked CE in one Pallas kernel.
    # Only the shifted positions (0..T-2 predicting tokens 1..T-1) are needed
    # for the returned (loss, loss*active_sum, active_sum) tuple, so the
    # unused last-position logits are never computed and the [B*T, V] logits
    # tensor never touches HBM.
    x = jnp.transpose(out, (1, 0, 2))[:, :-1, :].reshape(B * (T - 1), H)
    shift_labels = target_ids[:, 1:].reshape(-1).astype(jnp.int32)
    active = (target_mask[:, 1:] != 0).reshape(-1).astype(jnp.float32)

    nll = lm_ce_pallas(x, shift_labels, params["word_emb"],
                       params["dense_w"], params["dense_b"])

    valid = (shift_labels != -1).astype(jnp.float32)   # ignore_index=-1
    mask = active * valid
    denom = jnp.maximum(jnp.sum(mask), 1.0)            # NaN guard
    loss = jnp.sum(nll * mask) / denom
    active_sum = jnp.sum(active).astype(jnp.int32)     # active_loss.sum()
    return loss, loss * active_sum.astype(loss.dtype), active_sum


# ------------------------------------------------------------------
# Deterministic parameter init (shapes from Seq2Seq.__init__)
# ------------------------------------------------------------------

def init_params(key, H, V, F=64):
    keys = iter(jax.random.split(key, 24))

    def w(shape, scale=0.05):
        return (scale * jax.random.normal(next(keys), shape)).astype(jnp.float32)

    z = lambda n: jnp.zeros((n,), jnp.float32)
    return dict(
        # encoder stand-in
        word_emb=w((V, H)),
        enc_w=w((H, H)), enc_b=z(H),
        # decoder stand-in (single layer, single head)
        wq=w((H, H)), wk=w((H, H)), wv=w((H, H)), wo=w((H, H)),
        cq=w((H, H)), ck=w((H, H)), cv=w((H, H)), co=w((H, H)),
        ff1=w((H, F)), ffb1=z(F), ff2=w((F, H)), ffb2=z(H),
        # Seq2Seq-owned parameters (weights stored [in, out] for x @ W + b)
        dense_w=w((H, H)), dense_b=z(H),
        fusion1_w=w((3 * H, H)), fusion1_b=z(H),
        fusion2_w=w((3 * H, H)), fusion2_b=z(H),
        fusion3_w=w((3 * H, H)), fusion3_b=z(H),
        # TODO(synk): the PyTorch source declares nn.Linear(4*H, H) for
        # `fusion` while feeding it a 3*H concat (shape bug in the original);
        # a consistent (3*H -> H) weight is used here.
        fusion_w=w((3 * H, H)), fusion_b=z(H),
        # lm_head has no bias and is tied to word_emb (tie_weights()).
    )


# ------------------------------------------------------------------

if __name__ == "__main__":
    # 128-lane-aligned small shapes (H, V multiples of 128).
    H, V = 128, 512
    B, S, T = 2, 8, 8

    key = jax.random.PRNGKey(0)
    kp, k1, k2, k3, k4 = jax.random.split(key, 5)
    params = init_params(kp, H=H, V=V)

    src_ant_ids = jax.random.randint(k1, (B, S), 0, V, dtype=jnp.int32)
    so_title_ids = jax.random.randint(k2, (B, S), 0, V, dtype=jnp.int32)
    so_api_ids = jax.random.randint(k3, (B, S), 0, V, dtype=jnp.int32)
    target_ids = jax.random.randint(k4, (B, T), 0, V, dtype=jnp.int32)

    src_ant_mask = jnp.ones((B, S), jnp.int32).at[:, -2:].set(0)
    so_title_mask = jnp.ones((B, S), jnp.int32)
    so_api_mask = jnp.ones((B, S), jnp.int32)
    target_mask = jnp.ones((B, T), jnp.int32).at[:, -1:].set(0)

    loss, scaled_loss, active_sum = seq2seq_forward(
        params, src_ant_ids, src_ant_mask, so_title_ids, so_title_mask,
        so_api_ids, so_api_mask, target_ids, target_mask)
    jax.block_until_ready((loss, scaled_loss, active_sum))
    print("KERNEL_OK")
</pallas_src>

<mosaic_0001>
module attributes {stable_mosaic.version = 11 : i64} {
  func.func @_fusion_kernel(%arg0: i32, %arg1: memref<16x128xf32, #tpu.memory_space<vmem>>, %arg2: memref<16x128xf32, #tpu.memory_space<vmem>>, %arg3: memref<16x128xf32, #tpu.memory_space<vmem>>, %arg4: memref<128x128xbf16, #tpu.memory_space<vmem>>, %arg5: memref<128x128xbf16, #tpu.memory_space<vmem>>, %arg6: memref<128x128xbf16, #tpu.memory_space<vmem>>, %arg7: memref<128x128xbf16, #tpu.memory_space<vmem>>, %arg8: memref<128x128xbf16, #tpu.memory_space<vmem>>, %arg9: memref<1x128xf32, #tpu.memory_space<vmem>>, %arg10: memref<16x128xf32, #tpu.memory_space<vmem>>) attributes {dimension_semantics = [#tpu.dimension_semantics<parallel>], iteration_bounds = array<i64: 1>, scalar_prefetch = 0 : i64, scratch_operands = 0 : i64, tpu.core_type = #tpu.core_type<tc>, window_params = [{transform_indices = @transform_0, window_bounds = array<i64: 16, 128>}, {transform_indices = @transform_1, window_bounds = array<i64: 16, 128>}, {transform_indices = @transform_2, window_bounds = array<i64: 16, 128>}, {pipeline_mode = #tpu.pipeline_mode<synchronous>, transform_indices = @transform_3, window_bounds = array<i64: 128, 128>}, {pipeline_mode = #tpu.pipeline_mode<synchronous>, transform_indices = @transform_4, window_bounds = array<i64: 128, 128>}, {pipeline_mode = #tpu.pipeline_mode<synchronous>, transform_indices = @transform_5, window_bounds = array<i64: 128, 128>}, {pipeline_mode = #tpu.pipeline_mode<synchronous>, transform_indices = @transform_6, window_bounds = array<i64: 128, 128>}, {pipeline_mode = #tpu.pipeline_mode<synchronous>, transform_indices = @transform_7, window_bounds = array<i64: 128, 128>}, {pipeline_mode = #tpu.pipeline_mode<synchronous>, transform_indices = @transform_8, window_bounds = array<i64: 1, 128>}, {transform_indices = @transform_9, window_bounds = array<i64: 16, 128>}]} {
    %c0 = arith.constant 0 : index
    %c0_0 = arith.constant 0 : index
    %0 = vector.load %arg1[%c0, %c0_0] : memref<16x128xf32, #tpu.memory_space<vmem>>, vector<16x128xf32>
    %c0_1 = arith.constant 0 : index
    %c0_2 = arith.constant 0 : index
    %1 = vector.load %arg2[%c0_1, %c0_2] : memref<16x128xf32, #tpu.memory_space<vmem>>, vector<16x128xf32>
    %c0_3 = arith.constant 0 : index
    %c0_4 = arith.constant 0 : index
    %2 = vector.load %arg3[%c0_3, %c0_4] : memref<16x128xf32, #tpu.memory_space<vmem>>, vector<16x128xf32>
    %3 = arith.mulf %0, %1 : vector<16x128xf32>
    %4 = arith.mulf %3, %2 : vector<16x128xf32>
    %5 = arith.truncf %0 : vector<16x128xf32> to vector<16x128xbf16>
    %c0_5 = arith.constant 0 : index
    %c0_6 = arith.constant 0 : index
    %6 = vector.load %arg4[%c0_5, %c0_6] : memref<128x128xbf16, #tpu.memory_space<vmem>>, vector<128x128xbf16>
    %cst = arith.constant dense<0.000000e+00> : vector<16x128xf32>
    %7 = tpu.matmul %5, %6, %cst {dimension_numbers = #tpu.dot_dimension_numbers<[1], [0], [0], [1], [0, 0, 1, 1], [], []>} : vector<16x128xbf16>, vector<128x128xbf16>, vector<16x128xf32> -> vector<16x128xf32>
    %8 = arith.truncf %1 : vector<16x128xf32> to vector<16x128xbf16>
    %c0_7 = arith.constant 0 : index
    %c0_8 = arith.constant 0 : index
    %9 = vector.load %arg5[%c0_7, %c0_8] : memref<128x128xbf16, #tpu.memory_space<vmem>>, vector<128x128xbf16>
    %cst_9 = arith.constant dense<0.000000e+00> : vector<16x128xf32>
    %10 = tpu.matmul %8, %9, %cst_9 {dimension_numbers = #tpu.dot_dimension_numbers<[1], [0], [0], [1], [0, 0, 1, 1], [], []>} : vector<16x128xbf16>, vector<128x128xbf16>, vector<16x128xf32> -> vector<16x128xf32>
    %11 = arith.addf %7, %10 : vector<16x128xf32>
    %12 = arith.truncf %2 : vector<16x128xf32> to vector<16x128xbf16>
    %c0_10 = arith.constant 0 : index
    %c0_11 = arith.constant 0 : index
    %13 = vector.load %arg6[%c0_10, %c0_11] : memref<128x128xbf16, #tpu.memory_space<vmem>>, vector<128x128xbf16>
    %cst_12 = arith.constant dense<0.000000e+00> : vector<16x128xf32>
    %14 = tpu.matmul %12, %13, %cst_12 {dimension_numbers = #tpu.dot_dimension_numbers<[1], [0], [0], [1], [0, 0, 1, 1], [], []>} : vector<16x128xbf16>, vector<128x128xbf16>, vector<16x128xf32> -> vector<16x128xf32>
    %15 = arith.addf %11, %14 : vector<16x128xf32>
    %16 = arith.truncf %3 : vector<16x128xf32> to vector<16x128xbf16>
    %c0_13 = arith.constant 0 : index
    %c0_14 = arith.constant 0 : index
    %17 = vector.load %arg7[%c0_13, %c0_14] : memref<128x128xbf16, #tpu.memory_space<vmem>>, vector<128x128xbf16>
    %cst_15 = arith.constant dense<0.000000e+00> : vector<16x128xf32>
    %18 = tpu.matmul %16, %17, %cst_15 {dimension_numbers = #tpu.dot_dimension_numbers<[1], [0], [0], [1], [0, 0, 1, 1], [], []>} : vector<16x128xbf16>, vector<128x128xbf16>, vector<16x128xf32> -> vector<16x128xf32>
    %19 = arith.addf %15, %18 : vector<16x128xf32>
    %20 = arith.truncf %4 : vector<16x128xf32> to vector<16x128xbf16>
    %c0_16 = arith.constant 0 : index
    %c0_17 = arith.constant 0 : index
    %21 = vector.load %arg8[%c0_16, %c0_17] : memref<128x128xbf16, #tpu.memory_space<vmem>>, vector<128x128xbf16>
    %cst_18 = arith.constant dense<0.000000e+00> : vector<16x128xf32>
    %22 = tpu.matmul %20, %21, %cst_18 {dimension_numbers = #tpu.dot_dimension_numbers<[1], [0], [0], [1], [0, 0, 1, 1], [], []>} : vector<16x128xbf16>, vector<128x128xbf16>, vector<16x128xf32> -> vector<16x128xf32>
    %23 = arith.addf %19, %22 : vector<16x128xf32>
    %c0_19 = arith.constant 0 : index
    %c0_20 = arith.constant 0 : index
    %24 = vector.load %arg9[%c0_19, %c0_20] : memref<1x128xf32, #tpu.memory_space<vmem>>, vector<1x128xf32>
    %25 = vector.broadcast %24 : vector<1x128xf32> to vector<16x128xf32>
    %26 = arith.addf %23, %25 : vector<16x128xf32>
    %c0_21 = arith.constant 0 : index
    %c0_22 = arith.constant 0 : index
    %27 = vector.load %arg10[%c0_21, %c0_22] : memref<16x128xf32, #tpu.memory_space<vmem>>, vector<16x128xf32>
    tpu.vector_store %arg10[%c0_21, %c0_22], %26 {strides = array<i32>} : memref<16x128xf32, #tpu.memory_space<vmem>>, vector<16x128xf32>,
    return
  }
  func.func @transform_0(%arg0: i32) -> (i32, i32) {
    %c0_i32 = arith.constant 0 : i32
    %c0_i32_0 = arith.constant 0 : i32
    return %arg0, %c0_i32 : i32, i32
  }
  func.func @transform_1(%arg0: i32) -> (i32, i32) {
    %c0_i32 = arith.constant 0 : i32
    %c0_i32_0 = arith.constant 0 : i32
    return %arg0, %c0_i32 : i32, i32
  }
  func.func @transform_2(%arg0: i32) -> (i32, i32) {
    %c0_i32 = arith.constant 0 : i32
    %c0_i32_0 = arith.constant 0 : i32
    return %arg0, %c0_i32 : i32, i32
  }
  func.func @transform_3(%arg0: i32) -> (i32, i32) {
    %c0_i32 = arith.constant 0 : i32
    %c0_i32_0 = arith.constant 0 : i32
    %c0_i32_1 = arith.constant 0 : i32
    return %c0_i32, %c0_i32_0 : i32, i32
  }
  func.func @transform_4(%arg0: i32) -> (i32, i32) {
    %c0_i32 = arith.constant 0 : i32
    %c0_i32_0 = arith.constant 0 : i32
    %c0_i32_1 = arith.constant 0 : i32
    return %c0_i32, %c0_i32_0 : i32, i32
  }
  func.func @transform_5(%arg0: i32) -> (i32, i32) {
    %c0_i32 = arith.constant 0 : i32
    %c0_i32_0 = arith.constant 0 : i32
    %c0_i32_1 = arith.constant 0 : i32
    return %c0_i32, %c0_i32_0 : i32, i32
  }
  func.func @transform_6(%arg0: i32) -> (i32, i32) {
    %c0_i32 = arith.constant 0 : i32
    %c0_i32_0 = arith.constant 0 : i32
    %c0_i32_1 = arith.constant 0 : i32
    return %c0_i32, %c0_i32_0 : i32, i32
  }
  func.func @transform_7(%arg0: i32) -> (i32, i32) {
    %c0_i32 = arith.constant 0 : i32
    %c0_i32_0 = arith.constant 0 : i32
    %c0_i32_1 = arith.constant 0 : i32
    return %c0_i32, %c0_i32_0 : i32, i32
  }
  func.func @transform_8(%arg0: i32) -> (i32, i32) {
    %c0_i32 = arith.constant 0 : i32
    %c0_i32_0 = arith.constant 0 : i32
    %c0_i32_1 = arith.constant 0 : i32
    return %c0_i32, %c0_i32_0 : i32, i32
  }
  func.func @transform_9(%arg0: i32) -> (i32, i32) {
    %c0_i32 = arith.constant 0 : i32
    %c0_i32_0 = arith.constant 0 : i32
    return %arg0, %c0_i32 : i32, i32
  }
}

module attributes {stable_mosaic.version = 11 : i64} {
  func.func @_lm_ce_kernel(%arg0: i32, %arg1: i32, %arg2: memref<16x128xf32, #tpu.memory_space<vmem>>, %arg3: memref<128x128xbf16, #tpu.memory_space<vmem>>, %arg4: memref<1x128xf32, #tpu.memory_space<vmem>>, %arg5: memref<512x128xbf16, #tpu.memory_space<vmem>>, %arg6: memref<16x1xi32, #tpu.memory_space<vmem>>, %arg7: memref<16x1xf32, #tpu.memory_space<vmem>>, %arg8: memref<16x128xbf16, #tpu.memory_space<vmem>>, %arg9: memref<16x1xf32, #tpu.memory_space<vmem>>, %arg10: memref<16x1xf32, #tpu.memory_space<vmem>>, %arg11: memref<16x1xf32, #tpu.memory_space<vmem>>) attributes {dimension_semantics = [#tpu.dimension_semantics<parallel>, #tpu.dimension_semantics<arbitrary>], iteration_bounds = array<i64: 1, 1>, scalar_prefetch = 0 : i64, scratch_operands = 4 : i64, tpu.core_type = #tpu.core_type<tc>, window_params = [{transform_indices = @transform_0, window_bounds = array<i64: 16, 128>}, {pipeline_mode = #tpu.pipeline_mode<synchronous>, transform_indices = @transform_1, window_bounds = array<i64: 128, 128>}, {pipeline_mode = #tpu.pipeline_mode<synchronous>, transform_indices = @transform_2, window_bounds = array<i64: 1, 128>}, {transform_indices = @transform_3, window_bounds = array<i64: 512, 128>}, {transform_indices = @transform_4, window_bounds = array<i64: 16, 1>}, {transform_indices = @transform_5, window_bounds = array<i64: 16, 1>}]} {
    %c0_i32 = arith.constant 0 : i32
    %0 = arith.cmpi eq, %arg1, %c0_i32 : i32
    %1 = arith.extui %0 : i1 to i32
    %c0_i32_0 = arith.constant 0 : i32
    %2 = arith.cmpi ne, %1, %c0_i32_0 : i32
    scf.if %2 {
      %c0_25 = arith.constant 0 : index
      %c0_26 = arith.constant 0 : index
      %44 = vector.load %arg2[%c0_25, %c0_26] : memref<16x128xf32, #tpu.memory_space<vmem>>, vector<16x128xf32>
      %45 = arith.truncf %44 : vector<16x128xf32> to vector<16x128xbf16>
      %c0_27 = arith.constant 0 : index
      %c0_28 = arith.constant 0 : index
      %46 = vector.load %arg3[%c0_27, %c0_28] : memref<128x128xbf16, #tpu.memory_space<vmem>>, vector<128x128xbf16>
      %cst_29 = arith.constant dense<0.000000e+00> : vector<16x128xf32>
      %47 = tpu.matmul %45, %46, %cst_29 {dimension_numbers = #tpu.dot_dimension_numbers<[1], [0], [0], [1], [0, 0, 1, 1], [], []>} : vector<16x128xbf16>, vector<128x128xbf16>, vector<16x128xf32> -> vector<16x128xf32>
      %c0_30 = arith.constant 0 : index
      %c0_31 = arith.constant 0 : index
      %48 = vector.load %arg4[%c0_30, %c0_31] : memref<1x128xf32, #tpu.memory_space<vmem>>, vector<1x128xf32>
      %49 = vector.broadcast %48 : vector<1x128xf32> to vector<16x128xf32>
      %50 = arith.addf %47, %49 : vector<16x128xf32>
      %51 = math.tanh %50 : vector<16x128xf32>
      %52 = arith.truncf %51 : vector<16x128xf32> to vector<16x128xbf16>
      %c0_32 = arith.constant 0 : index
      %c0_33 = arith.constant 0 : index
      %53 = vector.load %arg8[%c0_32, %c0_33] : memref<16x128xbf16, #tpu.memory_space<vmem>>, vector<16x128xbf16>
      tpu.vector_store %arg8[%c0_32, %c0_33], %52 {strides = array<i32>} : memref<16x128xbf16, #tpu.memory_space<vmem>>, vector<16x128xbf16>,
      %cst_34 = arith.constant -1.000000e+30 : f32
      %54 = vector.broadcast %cst_34 : f32 to vector<16x1xf32>
      %c0_35 = arith.constant 0 : index
      %c0_36 = arith.constant 0 : index
      %55 = vector.load %arg9[%c0_35, %c0_36] : memref<16x1xf32, #tpu.memory_space<vmem>>, vector<16x1xf32>
      tpu.vector_store %arg9[%c0_35, %c0_36], %54 {strides = array<i32>} : memref<16x1xf32, #tpu.memory_space<vmem>>, vector<16x1xf32>,
      %cst_37 = arith.constant 0.000000e+00 : f32
      %56 = vector.broadcast %cst_37 : f32 to vector<16x1xf32>
      %c0_38 = arith.constant 0 : index
      %c0_39 = arith.constant 0 : index
      %57 = vector.load %arg10[%c0_38, %c0_39] : memref<16x1xf32, #tpu.memory_space<vmem>>, vector<16x1xf32>
      tpu.vector_store %arg10[%c0_38, %c0_39], %56 {strides = array<i32>} : memref<16x1xf32, #tpu.memory_space<vmem>>, vector<16x1xf32>,
      %cst_40 = arith.constant 0.000000e+00 : f32
      %58 = vector.broadcast %cst_40 : f32 to vector<16x1xf32>
      %c0_41 = arith.constant 0 : index
      %c0_42 = arith.constant 0 : index
      %59 = vector.load %arg11[%c0_41, %c0_42] : memref<16x1xf32, #tpu.memory_space<vmem>>, vector<16x1xf32>
      tpu.vector_store %arg11[%c0_41, %c0_42], %58 {strides = array<i32>} : memref<16x1xf32, #tpu.memory_space<vmem>>, vector<16x1xf32>,
    } else {
    }
    %c0 = arith.constant 0 : index
    %c0_1 = arith.constant 0 : index
    %3 = vector.load %arg8[%c0, %c0_1] : memref<16x128xbf16, #tpu.memory_space<vmem>>, vector<16x128xbf16>
    %c0_2 = arith.constant 0 : index
    %c0_3 = arith.constant 0 : index
    %4 = vector.load %arg5[%c0_2, %c0_3] : memref<512x128xbf16, #tpu.memory_space<vmem>>, vector<512x128xbf16>
    %cst = arith.constant dense<0.000000e+00> : vector<16x512xf32>
    %5 = tpu.matmul %3, %4, %cst {dimension_numbers = #tpu.dot_dimension_numbers<[1], [1], [0], [0], [0, 0, 1, 0], [], []>} : vector<16x128xbf16>, vector<512x128xbf16>, vector<16x512xf32> -> vector<16x512xf32>
    %c512_i32 = arith.constant 512 : i32
    %6 = arith.muli %arg1, %c512_i32 : i32
    %7 = tpu.iota {dimensions = array<i32: 1>} : vector<16x512xi32>
    %8 = vector.broadcast %6 : i32 to vector<16x512xi32>
    %9 = arith.addi %8, %7 : vector<16x512xi32>
    %c512_i32_4 = arith.constant 512 : i32
    %10 = vector.broadcast %c512_i32_4 : i32 to vector<16x512xi32>
    %11 = arith.cmpi slt, %9, %10 : vector<16x512xi32>
    %cst_5 = arith.constant -1.000000e+30 : f32
    %12 = vector.broadcast %cst_5 : f32 to vector<16x512xf32>
    %13 = arith.select %11, %5, %12 : vector<16x512xi1>, vector<16x512xf32>
    %c0_6 = arith.constant 0 : index
    %c0_7 = arith.constant 0 : index
    %14 = vector.load %arg6[%c0_6, %c0_7] : memref<16x1xi32, #tpu.memory_space<vmem>>, vector<16x1xi32>
    %15 = vector.broadcast %14 : vector<16x1xi32> to vector<16x512xi32>
    %16 = arith.cmpi eq, %9, %15 : vector<16x512xi32>
    %17 = arith.extui %16 : vector<16x512xi1> to vector<16x512xi32>
    %18 = arith.sitofp %17 : vector<16x512xi32> to vector<16x512xf32>
    %c0_8 = arith.constant 0 : index
    %c0_9 = arith.constant 0 : index
    %19 = vector.load %arg11[%c0_8, %c0_9] : memref<16x1xf32, #tpu.memory_space<vmem>>, vector<16x1xf32>
    %20 = arith.mulf %13, %18 : vector<16x512xf32>
    %cst_10 = arith.constant dense<0.000000e+00> : vector<16xf32>
    %21 = vector.multi_reduction <add>, %20, %cst_10 [1] : vector<16x512xf32> to vector<16xf32>
    %22 = vector.shape_cast %21 : vector<16xf32> to vector<16x1xf32>
    %23 = arith.addf %19, %22 : vector<16x1xf32>
    %c0_11 = arith.constant 0 : index
    %c0_12 = arith.constant 0 : index
    %24 = vector.load %arg11[%c0_11, %c0_12] : memref<16x1xf32, #tpu.memory_space<vmem>>, vector<16x1xf32>
    tpu.vector_store %arg11[%c0_11, %c0_12], %23 {strides = array<i32>} : memref<16x1xf32, #tpu.memory_space<vmem>>, vector<16x1xf32>,
    %c0_13 = arith.constant 0 : index
    %c0_14 = arith.constant 0 : index
    %25 = vector.load %arg9[%c0_13, %c0_14] : memref<16x1xf32, #tpu.memory_space<vmem>>, vector<16x1xf32>
    %cst_15 = arith.constant dense<0xFF800000> : vector<16xf32>
    %26 = vector.multi_reduction <maximumf>, %13, %cst_15 [1] : vector<16x512xf32> to vector<16xf32>
    %27 = vector.shape_cast %26 : vector<16xf32> to vector<16x1xf32>
    %28 = arith.maximumf %25, %27 : vector<16x1xf32>
    %c0_16 = arith.constant 0 : index
    %c0_17 = arith.constant 0 : index
    %29 = vector.load %arg10[%c0_16, %c0_17] : memref<16x1xf32, #tpu.memory_space<vmem>>, vector<16x1xf32>
    %30 = arith.subf %25, %28 : vector<16x1xf32>
    %31 = math.exp %30 : vector<16x1xf32>
    %32 = arith.mulf %29, %31 : vector<16x1xf32>
    %33 = vector.broadcast %28 : vector<16x1xf32> to vector<16x512xf32>
    %34 = arith.subf %13, %33 : vector<16x512xf32>
    %35 = math.exp %34 : vector<16x512xf32>
    %cst_18 = arith.constant dense<0.000000e+00> : vector<16xf32>
    %36 = vector.multi_reduction <add>, %35, %cst_18 [1] : vector<16x512xf32> to vector<16xf32>
    %37 = vector.shape_cast %36 : vector<16xf32> to vector<16x1xf32>
    %38 = arith.addf %32, %37 : vector<16x1xf32>
    %c0_19 = arith.constant 0 : index
    %c0_20 = arith.constant 0 : index
    %39 = vector.load %arg10[%c0_19, %c0_20] : memref<16x1xf32, #tpu.memory_space<vmem>>, vector<16x1xf32>
    tpu.vector_store %arg10[%c0_19, %c0_20], %38 {strides = array<i32>} : memref<16x1xf32, #tpu.memory_space<vmem>>, vector<16x1xf32>,
    %c0_21 = arith.constant 0 : index
    %c0_22 = arith.constant 0 : index
    %40 = vector.load %arg9[%c0_21, %c0_22] : memref<16x1xf32, #tpu.memory_space<vmem>>, vector<16x1xf32>
    tpu.vector_store %arg9[%c0_21, %c0_22], %28 {strides = array<i32>} : memref<16x1xf32, #tpu.memory_space<vmem>>, vector<16x1xf32>,
    %c0_i32_23 = arith.constant 0 : i32
    %41 = arith.cmpi eq, %arg1, %c0_i32_23 : i32
    %42 = arith.extui %41 : i1 to i32
    %c0_i32_24 = arith.constant 0 : i32
    %43 = arith.cmpi ne, %42, %c0_i32_24 : i32
    scf.if %43 {
      %c0_25 = arith.constant 0 : index
      %c0_26 = arith.constant 0 : index
      %44 = vector.load %arg9[%c0_25, %c0_26] : memref<16x1xf32, #tpu.memory_space<vmem>>, vector<16x1xf32>
      %c0_27 = arith.constant 0 : index
      %c0_28 = arith.constant 0 : index
      %45 = vector.load %arg10[%c0_27, %c0_28] : memref<16x1xf32, #tpu.memory_space<vmem>>, vector<16x1xf32>
      %46 = math.log %45 : vector<16x1xf32>
      %47 = arith.addf %44, %46 : vector<16x1xf32>
      %c0_29 = arith.constant 0 : index
      %c0_30 = arith.constant 0 : index
      %48 = vector.load %arg11[%c0_29, %c0_30] : memref<16x1xf32, #tpu.memory_space<vmem>>, vector<16x1xf32>
      %49 = arith.subf %47, %48 : vector<16x1xf32>
      %c0_31 = arith.constant 0 : index
      %c0_32 = arith.constant 0 : index
      %50 = vector.load %arg7[%c0_31, %c0_32] : memref<16x1xf32, #tpu.memory_space<vmem>>, vector<16x1xf32>
      tpu.vector_store %arg7[%c0_31, %c0_32], %49 {strides = array<i32>} : memref<16x1xf32, #tpu.memory_space<vmem>>, vector<16x1xf32>,
    } else {
    }
    return
  }
  func.func @transform_0(%arg0: i32, %arg1: i32) -> (i32, i32) {
    %c0_i32 = arith.constant 0 : i32
    %c0_i32_0 = arith.constant 0 : i32
    return %arg0, %c0_i32 : i32, i32
  }
  func.func @transform_1(%arg0: i32, %arg1: i32) -> (i32, i32) {
    %c0_i32 = arith.constant 0 : i32
    %c0_i32_0 = arith.constant 0 : i32
    %c0_i32_1 = arith.constant 0 : i32
    return %c0_i32, %c0_i32_0 : i32, i32
  }
  func.func @transform_2(%arg0: i32, %arg1: i32) -> (i32, i32) {
    %c0_i32 = arith.constant 0 : i32
    %c0_i32_0 = arith.constant 0 : i32
    %c0_i32_1 = arith.constant 0 : i32
    return %c0_i32, %c0_i32_0 : i32, i32
  }
  func.func @transform_3(%arg0: i32, %arg1: i32) -> (i32, i32) {
    %c0_i32 = arith.constant 0 : i32
    %c0_i32_0 = arith.constant 0 : i32
    return %arg1, %c0_i32 : i32, i32
  }
  func.func @transform_4(%arg0: i32, %arg1: i32) -> (i32, i32) {
    %c0_i32 = arith.constant 0 : i32
    %c0_i32_0 = arith.constant 0 : i32
    return %arg0, %c0_i32 : i32, i32
  }
  func.func @transform_5(%arg0: i32, %arg1: i32) -> (i32, i32) {
    %c0_i32 = arith.constant 0 : i32
    %c0_i32_0 = arith.constant 0 : i32
    return %arg0, %c0_i32 : i32, i32
  }
}

</mosaic_0001>

<llo_original>
// kernel: seq2seq_forward.2
$region0: #{seq2seq_forward.2}
  #allocation0 [shape = 'u32[]', space=smem, size = 0x4, offset = 0x4, fixed_abs, tag = 'smem constant byte address 0x4 - core index']
  #allocation1 [shape = 'u32[144,128]{1,0:T(1,128)}', space=vmem, size = 0x12000, scoped, tag = 'internal scratch']
  %s0 = inlined_call_operand.vmem [shape: f32[16,128], index: 0, kind: input, shape index: {}]
  %s1 = inlined_call_operand.vmem [shape: f32[16,128], index: 1, kind: input, shape index: {}]
  %s2 = inlined_call_operand.vmem [shape: f32[16,128], index: 2, kind: input, shape index: {}]
  %s3 = inlined_call_operand.vmem [shape: bf16[128,128], index: 3, kind: input, shape index: {}]
  %s4 = inlined_call_operand.vmem [shape: bf16[128,128], index: 4, kind: input, shape index: {}]
  %s5 = inlined_call_operand.vmem [shape: bf16[128,128], index: 5, kind: input, shape index: {}]
  %s6 = inlined_call_operand.vmem [shape: bf16[128,128], index: 6, kind: input, shape index: {}]
  %s7 = inlined_call_operand.vmem [shape: bf16[128,128], index: 7, kind: input, shape index: {}]
  %s8 = inlined_call_operand.vmem [shape: f32[1,128], index: 8, kind: input, shape index: {}]
  %s9 = inlined_call_operand.vmem [shape: f32[16,128], index: 9, kind: output, shape index: {}]
  %s10 = sld [smem:[#allocation0]]
  $region46: #{seq2seq_forward.2} parent=0
    _
  %s12 = ssub.s32 1, %s10
  %s13 = scalar_select 0, %s12, %s10
  // Predicated region
  $region2: #{seq2seq_forward.2} parent=0 // pred_check
    _
  $region3: #{seq2seq_forward.2} parent=0 // pred_check_branch
    %15 = sbr.rel (0) target = $region5
  $region4: #{seq2seq_forward.2} parent=0 // pred_region
    _
  $region5: #{seq2seq_forward.2} parent=0 // pred_fallthru
    _
  // Predicated region
  $region6: #{seq2seq_forward.2} parent=0 // pred_check
    _
  $region7: #{seq2seq_forward.2} parent=0 // pred_check_branch
    %17 = sbr.rel (0) target = $region9
  $region8: #{seq2seq_forward.2} parent=0 // pred_region
    _
  $region9: #{seq2seq_forward.2} parent=0 // pred_fallthru
    _
  // Predicated region
  $region10: #{seq2seq_forward.2} parent=0 // pred_check
    _
  $region11: #{seq2seq_forward.2} parent=0 // pred_check_branch
    %19 = sbr.rel (0) target = $region13
  $region12: #{seq2seq_forward.2} parent=0 // pred_region
    _
  $region13: #{seq2seq_forward.2} parent=0 // pred_fallthru
    _
  // Predicated region
  $region14: #{seq2seq_forward.2} parent=0 // pred_check
    _
  $region15: #{seq2seq_forward.2} parent=0 // pred_check_branch
    %21 = sbr.rel (0) target = $region17
  $region16: #{seq2seq_forward.2} parent=0 // pred_region
    _
  $region17: #{seq2seq_forward.2} parent=0 // pred_fallthru
    _
  // Predicated region
  $region18: #{seq2seq_forward.2} parent=0 // pred_check
    _
  $region19: #{seq2seq_forward.2} parent=0 // pred_check_branch
    %23 = sbr.rel (0) target = $region21
  $region20: #{seq2seq_forward.2} parent=0 // pred_region
    _
  $region21: #{seq2seq_forward.2} parent=0 // pred_fallthru
    _
  // Predicated region
  $region22: #{seq2seq_forward.2} parent=0 // pred_check
    _
  $region23: #{seq2seq_forward.2} parent=0 // pred_check_branch
    %25 = sbr.rel (0) target = $region25
  $region24: #{seq2seq_forward.2} parent=0 // pred_region
    _
  $region25: #{seq2seq_forward.2} parent=0 // pred_fallthru
    _
  // Predicated region
  $region26: #{seq2seq_forward.2} parent=0 // pred_check
    _
  $region27: #{seq2seq_forward.2} parent=0 // pred_check_branch
    %27 = sbr.rel (0) target = $region29
  $region28: #{seq2seq_forward.2} parent=0 // pred_region
    _
  $region29: #{seq2seq_forward.2} parent=0 // pred_fallthru
    _
  // Predicated region
  $region30: #{seq2seq_forward.2} parent=0 // pred_check
    _
  $region31: #{seq2seq_forward.2} parent=0 // pred_check_branch
    %29 = sbr.rel (0) target = $region33
  $region32: #{seq2seq_forward.2} parent=0 // pred_region
    _
  $region33: #{seq2seq_forward.2} parent=0 // pred_fallthru
    _
  // Predicated region
  $region34: #{seq2seq_forward.2} parent=0 // pred_check
    _
  $region35: #{seq2seq_forward.2} parent=0 // pred_check_branch
    %31 = sbr.rel (0) target = $region37
  $region36: #{seq2seq_forward.2} parent=0 // pred_region
    _
  $region37: #{seq2seq_forward.2} parent=0 // pred_fallthru
    _
  %v33 = vld [vmem:[%s0] sm:$0xff]
  %v34 = vld [vmem:[%s0 + $0x8] sm:$0xff]
  %v35 = vld [vmem:[%s1] sm:$0xff]
  %v36 = vld [vmem:[%s1 + $0x8] sm:$0xff]
  %v37 = vld [vmem:[%s2] sm:$0xff]
  %v38 = vld [vmem:[%s2 + $0x8] sm:$0xff]
  %v39 = vmul.f32 %v33, %v35
  %v40 = vmul.f32 %v34, %v36
  %v41 = vmul.f32 %v39, %v37
  %v42 = vmul.f32 %v40, %v38
  %v43 = vpack.c.bf16 %v34, %v33
  %v44 = vld [vmem:[%s3] sm:$0xf]
  %v45 = vld [vmem:[%s3 + $0x4] sm:$0xf]
  %v46 = vld [vmem:[%s3 + $0x8] sm:$0xf]
  %v47 = vld [vmem:[%s3 + $0xc] sm:$0xf]
  %v48 = vld [vmem:[%s3 + $0x10] sm:$0xf]
  %v49 = vld [vmem:[%s3 + $0x14] sm:$0xf]
  %v50 = vld [vmem:[%s3 + $0x18] sm:$0xf]
  %v51 = vld [vmem:[%s3 + $0x1c] sm:$0xf]
  %v52 = vld [vmem:[%s3 + $0x20] sm:$0xf]
  %v53 = vld [vmem:[%s3 + $0x24] sm:$0xf]
  %v54 = vld [vmem:[%s3 + $0x28] sm:$0xf]
  %v55 = vld [vmem:[%s3 + $0x2c] sm:$0xf]
  %v56 = vld [vmem:[%s3 + $0x30] sm:$0xf]
  %v57 = vld [vmem:[%s3 + $0x34] sm:$0xf]
  %v58 = vld [vmem:[%s3 + $0x38] sm:$0xf]
  %v59 = vld [vmem:[%s3 + $0x3c] sm:$0xf]
  %v60 = vpack.c.bf16 %v36, %v35
  %v61 = vld [vmem:[%s4] sm:$0xf]
  %v62 = vld [vmem:[%s4 + $0x4] sm:$0xf]
  %v63 = vld [vmem:[%s4 + $0x8] sm:$0xf]
  %v64 = vld [vmem:[%s4 + $0xc] sm:$0xf]
  %v65 = vld [vmem:[%s4 + $0x10] sm:$0xf]
  %v66 = vld [vmem:[%s4 + $0x14] sm:$0xf]
  %v67 = vld [vmem:[%s4 + $0x18] sm:$0xf]
  %v68 = vld [vmem:[%s4 + $0x1c] sm:$0xf]
  %v69 = vld [vmem:[%s4 + $0x20] sm:$0xf]
  %v70 = vld [vmem:[%s4 + $0x24] sm:$0xf]
  %v71 = vld [vmem:[%s4 + $0x28] sm:$0xf]
  %v72 = vld [vmem:[%s4 + $0x2c] sm:$0xf]
  %v73 = vld [vmem:[%s4 + $0x30] sm:$0xf]
  %v74 = vld [vmem:[%s4 + $0x34] sm:$0xf]
  %v75 = vld [vmem:[%s4 + $0x38] sm:$0xf]
  %v76 = vld [vmem:[%s4 + $0x3c] sm:$0xf]
  %v93 = vunpack.c.l.b16 %v61
  %v94 = vunpack.c.l.b16 %v62
  %v95 = vunpack.c.l.b16 %v63
  %v96 = vunpack.c.l.b16 %v64
  %v97 = vunpack.c.l.b16 %v65
  %v98 = vunpack.c.l.b16 %v66
  %v99 = vunpack.c.l.b16 %v67
  %v100 = vunpack.c.l.b16 %v68
  %v101 = vunpack.c.l.b16 %v69
  %v102 = vunpack.c.l.b16 %v70
  %v103 = vunpack.c.l.b16 %v71
  %v104 = vunpack.c.l.b16 %v72
  %v105 = vunpack.c.l.b16 %v73
  %v106 = vunpack.c.l.b16 %v74
  %v107 = vunpack.c.l.b16 %v75
  %v108 = vunpack.c.l.b16 %v76
  %v109 = vpack.c.b16 %v94, %v93
  %v110 = vpack.c.b16 %v96, %v95
  %v111 = vpack.c.b16 %v98, %v97
  %v112 = vpack.c.b16 %v100, %v99
  %v113 = vpack.c.b16 %v102, %v101
  %v114 = vpack.c.b16 %v104, %v103
  %v115 = vpack.c.b16 %v106, %v105
  %v116 = vpack.c.b16 %v108, %v107
  %125 = vmatprep.subr.bf16.mxu0 0
  %126 = vmatpush1.bf16.msra.mxu0 %v116
  %127 = vmatprep.subr.bf16.mxu0 0
  %128 = vmatpush1.bf16.msra.mxu0 %v115
  %129 = vmatprep.subr.bf16.mxu0 0
  %130 = vmatpush1.bf16.msra.mxu0 %v114
  %131 = vmatprep.subr.bf16.mxu0 0
  %132 = vmatpush1.bf16.msra.mxu0 %v113
  %133 = vmatprep.subr.bf16.mxu0 0
  %134 = vmatpush1.bf16.msra.mxu0 %v112
  %135 = vmatprep.subr.bf16.mxu0 0
  %136 = vmatpush1.bf16.msra.mxu0 %v111
  %137 = vmatprep.subr.bf16.mxu0 0
  %138 = vmatpush1.bf16.msra.mxu0 %v110
  %139 = vmatprep.subr.bf16.mxu0 0
  %140 = vmatpush1.bf16.msra.mxu0 %v109
  %141 = vmatprep.subr.bf16.mxu0 0
  %142 = vmatpush2.bf16.msra.mxu0 0
  %143 = vmatprep.subr.bf16.mxu0 0
  %144 = vmatpush2.bf16.msra.mxu0 0
  %145 = vmatprep.subr.bf16.mxu0 0
  %146 = vmatpush2.bf16.msra.mxu0 0
  %147 = vmatprep.subr.bf16.mxu0 0
  %148 = vmatpush2.bf16.msra.mxu0 0
  %149 = vmatprep.subr.bf16.mxu0 0
  %150 = vmatpush2.bf16.msra.mxu0 0
  %151 = vmatprep.subr.bf16.mxu0 0
  %152 = vmatpush2.bf16.msra.mxu0 0
  %153 = vmatprep.subr.bf16.mxu0 0
  %154 = vmatpush2.bf16.msra.mxu0 0
  %155 = vmatprep.subr.bf16.mxu0 0
  %156 = vmatpush2.bf16.msra.mxu0 0
  %157 = vmatprep.mubr.bf16.mxu0 0
  %158 = vmatmul.mubr.bf16.gmra.mxu0 %v60
  %v159 = vpop.f32.mrf.mxu0
  %v160 = vadd.f32 0.0, %v159
  %v161 = vpop.f32.mrf.mxu0
  %v162 = vpop.f32.mrf.mxu0
  %v163 = vadd.f32 0.0, %v162
  %v164 = vpop.f32.mrf.mxu0
  %165 = vdwg.mxu0
  %v182 = vunpack.c.l.b16 %v44
  %v183 = vunpack.c.l.b16 %v45
  %v184 = vunpack.c.l.b16 %v46
  %v185 = vunpack.c.l.b16 %v47
  %v186 = vunpack.c.l.b16 %v48
  %v187 = vunpack.c.l.b16 %v49
  %v188 = vunpack.c.l.b16 %v50
  %v189 = vunpack.c.l.b16 %v51
  %v190 = vunpack.c.l.b16 %v52
  %v191 = vunpack.c.l.b16 %v53
  %v192 = vunpack.c.l.b16 %v54
  %v193 = vunpack.c.l.b16 %v55
  %v194 = vunpack.c.l.b16 %v56
  %v195 = vunpack.c.l.b16 %v57
  %v196 = vunpack.c.l.b16 %v58
  %v197 = vunpack.c.l.b16 %v59
  %v198 = vpack.c.b16 %v183, %v182
  %v199 = vpack.c.b16 %v185, %v184
  %v200 = vpack.c.b16 %v187, %v186
  %v201 = vpack.c.b16 %v189, %v188
  %v202 = vpack.c.b16 %v191, %v190
  %v203 = vpack.c.b16 %v193, %v192
  %v204 = vpack.c.b16 %v195, %v194
  %v205 = vpack.c.b16 %v197, %v196
  %214 = vmatprep.subr.bf16.mxu0 0
  %215 = vmatpush1.bf16.msra.mxu0 %v205
  %216 = vmatprep.subr.bf16.mxu0 0
  %217 = vmatpush1.bf16.msra.mxu0 %v204
  %218 = vmatprep.subr.bf16.mxu0 0
  %219 = vmatpush1.bf16.msra.mxu0 %v203
  %220 = vmatprep.subr.bf16.mxu0 0
  %221 = vmatpush1.bf16.msra.mxu0 %v202
  %222 = vmatprep.subr.bf16.mxu0 0
  %223 = vmatpush1.bf16.msra.mxu0 %v201
  %224 = vmatprep.subr.bf16.mxu0 0
  %225 = vmatpush1.bf16.msra.mxu0 %v200
  %226 = vmatprep.subr.bf16.mxu0 0
  %227 = vmatpush1.bf16.msra.mxu0 %v199
  %228 = vmatprep.subr.bf16.mxu0 0
  %229 = vmatpush1.bf16.msra.mxu0 %v198
  %230 = vmatprep.subr.bf16.mxu0 0
  %231 = vmatpush2.bf16.msra.mxu0 0
  %232 = vmatprep.subr.bf16.mxu0 0
  %233 = vmatpush2.bf16.msra.mxu0 0
  %234 = vmatprep.subr.bf16.mxu0 0
  %235 = vmatpush2.bf16.msra.mxu0 0
  %236 = vmatprep.subr.bf16.mxu0 0
  %237 = vmatpush2.bf16.msra.mxu0 0
  %238 = vmatprep.subr.bf16.mxu0 0
  %239 = vmatpush2.bf16.msra.mxu0 0
  %240 = vmatprep.subr.bf16.mxu0 0
  %241 = vmatpush2.bf16.msra.mxu0 0
  %242 = vmatprep.subr.bf16.mxu0 0
  %243 = vmatpush2.bf16.msra.mxu0 0
  %244 = vmatprep.subr.bf16.mxu0 0
  %245 = vmatpush2.bf16.msra.mxu0 0
  %246 = vmatprep.mubr.bf16.mxu0 0
  %247 = vmatmul.mubr.bf16.gmra.mxu0 %v43
  %v248 = vpop.f32.mrf.mxu0
  %v249 = vadd.f32 %v160, %v248
  %v250 = vpop.f32.mrf.mxu0
  %v251 = vpop.f32.mrf.mxu0
  %v252 = vadd.f32 %v163, %v251
  %v253 = vpop.f32.mrf.mxu0
  %254 = vdwg.mxu0
  %v255 = vpack.c.bf16 %v38, %v37
  %v256 = vld [vmem:[%s5] sm:$0xf]
  %v257 = vld [vmem:[%s5 + $0x4] sm:$0xf]
  %v258 = vld [vmem:[%s5 + $0x8] sm:$0xf]
  %v259 = vld [vmem:[%s5 + $0xc] sm:$0xf]
  %v260 = vld [vmem:[%s5 + $0x10] sm:$0xf]
  %v261 = vld [vmem:[%s5 + $0x14] sm:$0xf]
  %v262 = vld [vmem:[%s5 + $0x18] sm:$0xf]
  %v263 = vld [vmem:[%s5 + $0x1c] sm:$0xf]
  %v264 = vld [vmem:[%s5 + $0x20] sm:$0xf]
  %v265 = vld [vmem:[%s5 + $0x24] sm:$0xf]
  %v266 = vld [vmem:[%s5 + $0x28] sm:$0xf]
  %v267 = vld [vmem:[%s5 + $0x2c] sm:$0xf]
  %v268 = vld [vmem:[%s5 + $0x30] sm:$0xf]
  %v269 = vld [vmem:[%s5 + $0x34] sm:$0xf]
  %v270 = vld [vmem:[%s5 + $0x38] sm:$0xf]
  %v271 = vld [vmem:[%s5 + $0x3c] sm:$0xf]
  %v288 = vunpack.c.l.b16 %v256
  %v289 = vunpack.c.l.b16 %v257
  %v290 = vunpack.c.l.b16 %v258
  %v291 = vunpack.c.l.b16 %v259
  %v292 = vunpack.c.l.b16 %v260
  %v293 = vunpack.c.l.b16 %v261
  %v294 = vunpack.c.l.b16 %v262
  %v295 = vunpack.c.l.b16 %v263
  %v296 = vunpack.c.l.b16 %v264
  %v297 = vunpack.c.l.b16 %v265
  %v298 = vunpack.c.l.b16 %v266
  %v299 = vunpack.c.l.b16 %v267
  %v300 = vunpack.c.l.b16 %v268
  %v301 = vunpack.c.l.b16 %v269
  %v302 = vunpack.c.l.b16 %v270
  %v303 = vunpack.c.l.b16 %v271
  %v304 = vpack.c.b16 %v289, %v288
  %v305 = vpack.c.b16 %v291, %v290
  %v306 = vpack.c.b16 %v293, %v292
  %v307 = vpack.c.b16 %v295, %v294
  %v308 = vpack.c.b16 %v297, %v296
  %v309 = vpack.c.b16 %v299, %v298
  %v310 = vpack.c.b16 %v301, %v300
  %v311 = vpack.c.b16 %v303, %v302
  %320 = vmatprep.subr.bf16.mxu0 0
  %321 = vmatpush1.bf16.msra.mxu0 %v311
  %322 = vmatprep.subr.bf16.mxu0 0
  %323 = vmatpush1.bf16.msra.mxu0 %v310
  %324 = vmatprep.subr.bf16.mxu0 0
  %325 = vmatpush1.bf16.msra.mxu0 %v309
  %326 = vmatprep.subr.bf16.mxu0 0
  %327 = vmatpush1.bf16.msra.mxu0 %v308
  %328 = vmatprep.subr.bf16.mxu0 0
  %329 = vmatpush1.bf16.msra.mxu0 %v307
  %330 = vmatprep.subr.bf16.mxu0 0
  %331 = vmatpush1.bf16.msra.mxu0 %v306
  %332 = vmatprep.subr.bf16.mxu0 0
  %333 = vmatpush1.bf16.msra.mxu0 %v305
  %334 = vmatprep.subr.bf16.mxu0 0
  %335 = vmatpush1.bf16.msra.mxu0 %v304
  %336 = vmatprep.subr.bf16.mxu0 0
  %337 = vmatpush2.bf16.msra.mxu0 0
  %338 = vmatprep.subr.bf16.mxu0 0
  %339 = vmatpush2.bf16.msra.mxu0 0
  %340 = vmatprep.subr.bf16.mxu0 0
  %341 = vmatpush2.bf16.msra.mxu0 0
  %342 = vmatprep.subr.bf16.mxu0 0
  %343 = vmatpush2.bf16.msra.mxu0 0
  %344 = vmatprep.subr.bf16.mxu0 0
  %345 = vmatpush2.bf16.msra.mxu0 0
  %346 = vmatprep.subr.bf16.mxu0 0
  %347 = vmatpush2.bf16.msra.mxu0 0
  %348 = vmatprep.subr.bf16.mxu0 0
  %349 = vmatpush2.bf16.msra.mxu0 0
  %350 = vmatprep.subr.bf16.mxu0 0
  %351 = vmatpush2.bf16.msra.mxu0 0
  %352 = vmatprep.mubr.bf16.mxu0 0
  %353 = vmatmul.mubr.bf16.gmra.mxu0 %v255
  %v354 = vpop.f32.mrf.mxu0
  %v355 = vadd.f32 0.0, %v354
  %v356 = vpop.f32.mrf.mxu0
  %v357 = vpop.f32.mrf.mxu0
  %v358 = vadd.f32 0.0, %v357
  %v359 = vpop.f32.mrf.mxu0
  %360 = vdwg.mxu0
  %v361 = vadd.f32 %v249, %v355
  %v362 = vadd.f32 %v252, %v358
  %v363 = vpack.c.bf16 %v40, %v39
  %v364 = vld [vmem:[%s6] sm:$0xf]
  %v365 = vld [vmem:[%s6 + $0x4] sm:$0xf]
  %v366 = vld [vmem:[%s6 + $0x8] sm:$0xf]
  %v367 = vld [vmem:[%s6 + $0xc] sm:$0xf]
  %v368 = vld [vmem:[%s6 + $0x10] sm:$0xf]
  %v369 = vld [vmem:[%s6 + $0x14] sm:$0xf]
  %v370 = vld [vmem:[%s6 + $0x18] sm:$0xf]
  %v371 = vld [vmem:[%s6 + $0x1c] sm:$0xf]
  %v372 = vld [vmem:[%s6 + $0x20] sm:$0xf]
  %v373 = vld [vmem:[%s6 + $0x24] sm:$0xf]
  %v374 = vld [vmem:[%s6 + $0x28] sm:$0xf]
  %v375 = vld [vmem:[%s6 + $0x2c] sm:$0xf]
  %v376 = vld [vmem:[%s6 + $0x30] sm:$0xf]
  %v377 = vld [vmem:[%s6 + $0x34] sm:$0xf]
  %v378 = vld [vmem:[%s6 + $0x38] sm:$0xf]
  %v379 = vld [vmem:[%s6 + $0x3c] sm:$0xf]
  %v396 = vunpack.c.l.b16 %v364
  %v397 = vunpack.c.l.b16 %v365
  %v398 = vunpack.c.l.b16 %v366
  %v399 = vunpack.c.l.b16 %v367
  %v400 = vunpack.c.l.b16 %v368
  %v401 = vunpack.c.l.b16 %v369
  %v402 = vunpack.c.l.b16 %v370
  %v403 = vunpack.c.l.b16 %v371
  %v404 = vunpack.c.l.b16 %v372
  %v405 = vunpack.c.l.b16 %v373
  %v406 = vunpack.c.l.b16 %v374
  %v407 = vunpack.c.l.b16 %v375
  %v408 = vunpack.c.l.b16 %v376
  %v409 = vunpack.c.l.b16 %v377
  %v410 = vunpack.c.l.b16 %v378
  %v411 = vunpack.c.l.b16 %v379
  %v412 = vpack.c.b16 %v397, %v396
  %v413 = vpack.c.b16 %v399, %v398
  %v414 = vpack.c.b16 %v401, %v400
  %v415 = vpack.c.b16 %v403, %v402
  %v416 = vpack.c.b16 %v405, %v404
  %v417 = vpack.c.b16 %v407, %v406
  %v418 = vpack.c.b16 %v409, %v408
  %v419 = vpack.c.b16 %v411, %v410
  %428 = vmatprep.subr.bf16.mxu0 0
  %429 = vmatpush1.bf16.msra.mxu0 %v419
  %430 = vmatprep.subr.bf16.mxu0 0
  %431 = vmatpush1.bf16.msra.mxu0 %v418
  %432 = vmatprep.subr.bf16.mxu0 0
  %433 = vmatpush1.bf16.msra.mxu0 %v417
  %434 = vmatprep.subr.bf16.mxu0 0
  %435 = vmatpush1.bf16.msra.mxu0 %v416
  %436 = vmatprep.subr.bf16.mxu0 0
  %437 = vmatpush1.bf16.msra.mxu0 %v415
  %438 = vmatprep.subr.bf16.mxu0 0
  %439 = vmatpush1.bf16.msra.mxu0 %v414
  %440 = vmatprep.subr.bf16.mxu0 0
  %441 = vmatpush1.bf16.msra.mxu0 %v413
  %442 = vmatprep.subr.bf16.mxu0 0
  %443 = vmatpush1.bf16.msra.mxu0 %v412
  %444 = vmatprep.subr.bf16.mxu0 0
  %445 = vmatpush2.bf16.msra.mxu0 0
  %446 = vmatprep.subr.bf16.mxu0 0
  %447 = vmatpush2.bf16.msra.mxu0 0
  %448 = vmatprep.subr.bf16.mxu0 0
  %449 = vmatpush2.bf16.msra.mxu0 0
  %450 = vmatprep.subr.bf16.mxu0 0
  %451 = vmatpush2.bf16.msra.mxu0 0
  %452 = vmatprep.subr.bf16.mxu0 0
  %453 = vmatpush2.bf16.msra.mxu0 0
  %454 = vmatprep.subr.bf16.mxu0 0
  %455 = vmatpush2.bf16.msra.mxu0 0
  %456 = vmatprep.subr.bf16.mxu0 0
  %457 = vmatpush2.bf16.msra.mxu0 0
  %458 = vmatprep.subr.bf16.mxu0 0
  %459 = vmatpush2.bf16.msra.mxu0 0
  %460 = vmatprep.mubr.bf16.mxu0 0
  %461 = vmatmul.mubr.bf16.gmra.mxu0 %v363
  %v462 = vpop.f32.mrf.mxu0
  %v463 = vadd.f32 0.0, %v462
  %v464 = vpop.f32.mrf.mxu0
  %v465 = vpop.f32.mrf.mxu0
  %v466 = vadd.f32 0.0, %v465
  %v467 = vpop.f32.mrf.mxu0
  %468 = vdwg.mxu0
  %v469 = vadd.f32 %v361, %v463
  %v470 = vadd.f32 %v362, %v466
  %v471 = vpack.c.bf16 %v42, %v41
  %v472 = vld [vmem:[%s7] sm:$0xf]
  %v473 = vld [vmem:[%s7 + $0x4] sm:$0xf]
  %v474 = vld [vmem:[%s7 + $0x8] sm:$0xf]
  %v475 = vld [vmem:[%s7 + $0xc] sm:$0xf]
  %v476 = vld [vmem:[%s7 + $0x10] sm:$0xf]
  %v477 = vld [vmem:[%s7 + $0x14] sm:$0xf]
  %v478 = vld [vmem:[%s7 + $0x18] sm:$0xf]
  %v479 = vld [vmem:[%s7 + $0x1c] sm:$0xf]
  %v480 = vld [vmem:[%s7 + $0x20] sm:$0xf]
  %v481 = vld [vmem:[%s7 + $0x24] sm:$0xf]
  %v482 = vld [vmem:[%s7 + $0x28] sm:$0xf]
  %v483 = vld [vmem:[%s7 + $0x2c] sm:$0xf]
  %v484 = vld [vmem:[%s7 + $0x30] sm:$0xf]
  %v485 = vld [vmem:[%s7 + $0x34] sm:$0xf]
  %v486 = vld [vmem:[%s7 + $0x38] sm:$0xf]
  %v487 = vld [vmem:[%s7 + $0x3c] sm:$0xf]
  %v504 = vunpack.c.l.b16 %v472
  %v505 = vunpack.c.l.b16 %v473
  %v506 = vunpack.c.l.b16 %v474
  %v507 = vunpack.c.l.b16 %v475
  %v508 = vunpack.c.l.b16 %v476
  %v509 = vunpack.c.l.b16 %v477
  %v510 = vunpack.c.l.b16 %v478
  %v511 = vunpack.c.l.b16 %v479
  %v512 = vunpack.c.l.b16 %v480
  %v513 = vunpack.c.l.b16 %v481
  %v514 = vunpack.c.l.b16 %v482
  %v515 = vunpack.c.l.b16 %v483
  %v516 = vunpack.c.l.b16 %v484
  %v517 = vunpack.c.l.b16 %v485
  %v518 = vunpack.c.l.b16 %v486
  %v519 = vunpack.c.l.b16 %v487
  %v520 = vpack.c.b16 %v505, %v504
  %v521 = vpack.c.b16 %v507, %v506
  %v522 = vpack.c.b16 %v509, %v508
  %v523 = vpack.c.b16 %v511, %v510
  %v524 = vpack.c.b16 %v513, %v512
  %v525 = vpack.c.b16 %v515, %v514
  %v526 = vpack.c.b16 %v517, %v516
  %v527 = vpack.c.b16 %v519, %v518
  %536 = vmatprep.subr.bf16.mxu0 0
  %537 = vmatpush1.bf16.msra.mxu0 %v527
  %538 = vmatprep.subr.bf16.mxu0 0
  %539 = vmatpush1.bf16.msra.mxu0 %v526
  %540 = vmatprep.subr.bf16.mxu0 0
  %541 = vmatpush1.bf16.msra.mxu0 %v525
  %542 = vmatprep.subr.bf16.mxu0 0
  %543 = vmatpush1.bf16.msra.mxu0 %v524
  %544 = vmatprep.subr.bf16.mxu0 0
  %545 = vmatpush1.bf16.msra.mxu0 %v523
  %546 = vmatprep.subr.bf16.mxu0 0
  %547 = vmatpush1.bf16.msra.mxu0 %v522
  %548 = vmatprep.subr.bf16.mxu0 0
  %549 = vmatpush1.bf16.msra.mxu0 %v521
  %550 = vmatprep.subr.bf16.mxu0 0
  %551 = vmatpush1.bf16.msra.mxu0 %v520
  %552 = vmatprep.subr.bf16.mxu0 0
  %553 = vmatpush2.bf16.msra.mxu0 0
  %554 = vmatprep.subr.bf16.mxu0 0
  %555 = vmatpush2.bf16.msra.mxu0 0
  %556 = vmatprep.subr.bf16.mxu0 0
  %557 = vmatpush2.bf16.msra.mxu0 0
  %558 = vmatprep.subr.bf16.mxu0 0
  %559 = vmatpush2.bf16.msra.mxu0 0
  %560 = vmatprep.subr.bf16.mxu0 0
  %561 = vmatpush2.bf16.msra.mxu0 0
  %562 = vmatprep.subr.bf16.mxu0 0
  %563 = vmatpush2.bf16.msra.mxu0 0
  %564 = vmatprep.subr.bf16.mxu0 0
  %565 = vmatpush2.bf16.msra.mxu0 0
  %566 = vmatprep.subr.bf16.mxu0 0
  %567 = vmatpush2.bf16.msra.mxu0 0
  %568 = vmatprep.mubr.bf16.mxu0 0
  %569 = vmatmul.mubr.bf16.gmra.mxu0 %v471
  %v570 = vpop.f32.mrf.mxu0
  %v571 = vadd.f32 0.0, %v570
  %v572 = vpop.f32.mrf.mxu0
  %v573 = vpop.f32.mrf.mxu0
  %v574 = vadd.f32 0.0, %v573
  %v575 = vpop.f32.mrf.mxu0
  %576 = vdwg.mxu0
  %v577 = vadd.f32 %v469, %v571
  %v578 = vadd.f32 %v470, %v574
  %v579 = vld [vmem:[%s8] sm:$0x1]
  %v581 = vlaneseq
  %v582 = vshrl.u32 %v581, 7
  %v583 = vsub.s32 0, %v582
  %v584 = vrot.slane %v579, %v583
  %v586 = vadd.f32 %v577, %v584
  %v587 = vadd.f32 %v578, %v584
  %588 = vst [vmem:[%s9] sm:$0xff] %v586
  %589 = vst [vmem:[%s9 + $0x8] sm:$0xff] %v587
  // Predicated region
  $region38: #{seq2seq_forward.2} parent=0 // pred_check
    _
  $region39: #{seq2seq_forward.2} parent=0 // pred_check_branch
    %591 = sbr.rel (0) target = $region41
  $region40: #{seq2seq_forward.2} parent=0 // pred_region
    _
  $region41: #{seq2seq_forward.2} parent=0 // pred_fallthru
    _
  // Predicated region
  $region42: #{seq2seq_forward.2} parent=0 // pred_check
    _
  $region43: #{seq2seq_forward.2} parent=0 // pred_check_branch
    %593 = sbr.rel (0) target = $region45
  $region44: #{seq2seq_forward.2} parent=0 // pred_region
    _
  $region45: #{seq2seq_forward.2} parent=0 // pred_fallthru
    _

// kernel: seq2seq_forward.3
$region0: #{seq2seq_forward.3}
  #allocation0 [shape = 'u32[]', space=smem, size = 0x4, offset = 0x4, fixed_abs, tag = 'smem constant byte address 0x4 - core index']
  #allocation1 [shape = 'u32[144,128]{1,0:T(1,128)}', space=vmem, size = 0x12000, scoped, tag = 'internal scratch']
  #allocation2 [shape = 'bf16[16,128]{1,0:T(8,128)(2,1)}', space=vmem, size = 0x1000, scoped, tag = 'scratch operand']
  #allocation3 [shape = 'f32[16,1]{1,0:T(8,128)}', space=vmem, size = 0x2000, scoped, tag = 'scratch operand']
  #allocation4 [shape = 'f32[16,1]{1,0:T(8,128)}', space=vmem, size = 0x2000, scoped, tag = 'scratch operand']
  #allocation5 [shape = 'f32[16,1]{1,0:T(8,128)}', space=vmem, size = 0x2000, scoped, tag = 'scratch operand']
  %s0 = inlined_call_operand.vmem [shape: f32[16,128], index: 0, kind: input, shape index: {}]
  %s1 = inlined_call_operand.vmem [shape: bf16[128,128], index: 1, kind: input, shape index: {}]
  %s2 = inlined_call_operand.vmem [shape: f32[1,128], index: 2, kind: input, shape index: {}]
  %s3 = inlined_call_operand.vmem [shape: bf16[512,128], index: 3, kind: input, shape index: {}]
  %s4 = inlined_call_operand.vmem [shape: s32[16,1], index: 4, kind: input, shape index: {}]
  %s5 = inlined_call_operand.vmem [shape: f32[16,1], index: 5, kind: output, shape index: {}]
  %s6 = sld [smem:[#allocation0]]
  $region38: #{seq2seq_forward.3} parent=0
    _
  %s8 = ssub.s32 1, %s6
  %s9 = scalar_select 0, %s8, %s6
  // Predicated region
  $region2: #{seq2seq_forward.3} parent=0 // pred_check
    _
  $region3: #{seq2seq_forward.3} parent=0 // pred_check_branch
    %11 = sbr.rel (0) target = $region5
  $region4: #{seq2seq_forward.3} parent=0 // pred_region
    _
  $region5: #{seq2seq_forward.3} parent=0 // pred_fallthru
    _
  // Predicated region
  $region6: #{seq2seq_forward.3} parent=0 // pred_check
    _
  $region7: #{seq2seq_forward.3} parent=0 // pred_check_branch
    %13 = sbr.rel (0) target = $region9
  $region8: #{seq2seq_forward.3} parent=0 // pred_region
    _
  $region9: #{seq2seq_forward.3} parent=0 // pred_fallthru
    _
  // Predicated region
  $region10: #{seq2seq_forward.3} parent=0 // pred_check
    _
  $region11: #{seq2seq_forward.3} parent=0 // pred_check_branch
    %15 = sbr.rel (0) target = $region13
  $region12: #{seq2seq_forward.3} parent=0 // pred_region
    _
  $region13: #{seq2seq_forward.3} parent=0 // pred_fallthru
    _
  // Predicated region
  $region14: #{seq2seq_forward.3} parent=0 // pred_check
    _
  $region15: #{seq2seq_forward.3} parent=0 // pred_check_branch
    %17 = sbr.rel (0) target = $region17
  $region16: #{seq2seq_forward.3} parent=0 // pred_region
    _
  $region17: #{seq2seq_forward.3} parent=0 // pred_fallthru
    _
  // Predicated region
  $region18: #{seq2seq_forward.3} parent=0 // pred_check
    _
  $region19: #{seq2seq_forward.3} parent=0 // pred_check_branch
    %19 = sbr.rel (0) target = $region21
  $region20: #{seq2seq_forward.3} parent=0 // pred_region
    _
  $region21: #{seq2seq_forward.3} parent=0 // pred_fallthru
    _
  %p21 = scmp.eq.s32.totalorder 0, 0
  // Predicated region
  $region22: #{seq2seq_forward.3} parent=0 // pred_check
    %p22 = pneg %p21
  $region23: #{seq2seq_forward.3} parent=0 // pred_check_branch
    %24 = sbr.rel (%p22) target = $region25
  $region24: #{seq2seq_forward.3} parent=0 // pred_region
    %v25 = vld [vmem:[%s0] sm:$0xff]
    %v26 = vld [vmem:[%s0 + $0x8] sm:$0xff]
    %v27 = vpack.c.bf16 %v26, %v25
    %v28 = vld [vmem:[%s1] sm:$0xf]
    %v29 = vld [vmem:[%s1 + $0x4] sm:$0xf]
    %v30 = vld [vmem:[%s1 + $0x8] sm:$0xf]
    %v31 = vld [vmem:[%s1 + $0xc] sm:$0xf]
    %v32 = vld [vmem:[%s1 + $0x10] sm:$0xf]
    %v33 = vld [vmem:[%s1 + $0x14] sm:$0xf]
    %v34 = vld [vmem:[%s1 + $0x18] sm:$0xf]
    %v35 = vld [vmem:[%s1 + $0x1c] sm:$0xf]
    %v36 = vld [vmem:[%s1 + $0x20] sm:$0xf]
    %v37 = vld [vmem:[%s1 + $0x24] sm:$0xf]
    %v38 = vld [vmem:[%s1 + $0x28] sm:$0xf]
    %v39 = vld [vmem:[%s1 + $0x2c] sm:$0xf]
    %v40 = vld [vmem:[%s1 + $0x30] sm:$0xf]
    %v41 = vld [vmem:[%s1 + $0x34] sm:$0xf]
    %v42 = vld [vmem:[%s1 + $0x38] sm:$0xf]
    %v43 = vld [vmem:[%s1 + $0x3c] sm:$0xf]
    %v44 = vld [vmem:[%s2] sm:$0x1]
    %v46 = vlaneseq
    %v47 = vshrl.u32 %v46, 7
    %v48 = vsub.s32 0, %v47
    %v49 = vrot.slane %v44, %v48
    %v67 = vunpack.c.l.b16 %v28
    %v68 = vunpack.c.l.b16 %v29
    %v69 = vunpack.c.l.b16 %v30
    %v70 = vunpack.c.l.b16 %v31
    %v71 = vunpack.c.l.b16 %v32
    %v72 = vunpack.c.l.b16 %v33
    %v73 = vunpack.c.l.b16 %v34
    %v74 = vunpack.c.l.b16 %v35
    %v75 = vunpack.c.l.b16 %v36
    %v76 = vunpack.c.l.b16 %v37
    %v77 = vunpack.c.l.b16 %v38
    %v78 = vunpack.c.l.b16 %v39
    %v79 = vunpack.c.l.b16 %v40
    %v80 = vunpack.c.l.b16 %v41
    %v81 = vunpack.c.l.b16 %v42
    %v82 = vunpack.c.l.b16 %v43
    %v83 = vpack.c.b16 %v68, %v67
    %v84 = vpack.c.b16 %v70, %v69
    %v85 = vpack.c.b16 %v72, %v71
    %v86 = vpack.c.b16 %v74, %v73
    %v87 = vpack.c.b16 %v76, %v75
    %v88 = vpack.c.b16 %v78, %v77
    %v89 = vpack.c.b16 %v80, %v79
    %v90 = vpack.c.b16 %v82, %v81
    %99 = vmatprep.subr.bf16.mxu0 0
    %100 = vmatpush1.bf16.msra.mxu0 %v90
    %101 = vmatprep.subr.bf16.mxu0 0
    %102 = vmatpush1.bf16.msra.mxu0 %v89
    %103 = vmatprep.subr.bf16.mxu0 0
    %104 = vmatpush1.bf16.msra.mxu0 %v88
    %105 = vmatprep.subr.bf16.mxu0 0
    %106 = vmatpush1.bf16.msra.mxu0 %v87
    %107 = vmatprep.subr.bf16.mxu0 0
    %108 = vmatpush1.bf16.msra.mxu0 %v86
    %109 = vmatprep.subr.bf16.mxu0 0
    %110 = vmatpush1.bf16.msra.mxu0 %v85
    %111 = vmatprep.subr.bf16.mxu0 0
    %112 = vmatpush1.bf16.msra.mxu0 %v84
    %113 = vmatprep.subr.bf16.mxu0 0
    %114 = vmatpush1.bf16.msra.mxu0 %v83
    %115 = vmatprep.subr.bf16.mxu0 0
    %116 = vmatpush2.bf16.msra.mxu0 0
    %117 = vmatprep.subr.bf16.mxu0 0
    %118 = vmatpush2.bf16.msra.mxu0 0
    %119 = vmatprep.subr.bf16.mxu0 0
    %120 = vmatpush2.bf16.msra.mxu0 0
    %121 = vmatprep.subr.bf16.mxu0 0
    %122 = vmatpush2.bf16.msra.mxu0 0
    %123 = vmatprep.subr.bf16.mxu0 0
    %124 = vmatpush2.bf16.msra.mxu0 0
    %125 = vmatprep.subr.bf16.mxu0 0
    %126 = vmatpush2.bf16.msra.mxu0 0
    %127 = vmatprep.subr.bf16.mxu0 0
    %128 = vmatpush2.bf16.msra.mxu0 0
    %129 = vmatprep.subr.bf16.mxu0 0
    %130 = vmatpush2.bf16.msra.mxu0 0
    %131 = vmatprep.mubr.bf16.mxu0 0
    %132 = vmatmul.mubr.bf16.gmra.mxu0 %v27
    %v133 = vpop.f32.mrf.mxu0
    %v134 = vadd.f32 %v49, %v133
    %v135 = vpop.f32.mrf.mxu0
    %v136 = vpop.f32.mrf.mxu0
    %v137 = vadd.f32 %v49, %v136
    %v138 = vpop.f32.mrf.mxu0
    %139 = vdwg.mxu0
    %v140 = vtanh.pop %v134
    %v141 = vtanh.pop %v137
    %v142 = vpack.c.bf16 %v141, %v140
    %v144 = vunpack.c.l.b16 %v142
    %v145 = vunpack.c.h.b16 %v142
    %v146 = vpack.c.b16 %v144, %v144
    %v147 = vpack.c.b16 %v145, %v145
    %150 = vst [vmem:[#allocation2] sm:$0xf] %v146
    %151 = vst [vmem:[#allocation2 + $0x4] sm:$0xf] %v147
    %vm152 = vcmask 7168
    %153 = vst.msk [vmem:[#allocation3] sm:$0xff] %vm152, -1e+30
    %154 = vst.msk [vmem:[#allocation3 + $0x8] sm:$0xff] %vm152, -1e+30
    %155 = vst.msk [vmem:[#allocation4] sm:$0xff] %vm152, 0.0
    %156 = vst.msk [vmem:[#allocation4 + $0x8] sm:$0xff] %vm152, 0.0
    %157 = vst.msk [vmem:[#allocation5] sm:$0xff] %vm152, 0.0
    %158 = vst.msk [vmem:[#allocation5 + $0x8] sm:$0xff] %vm152, 0.0
  $region25: #{seq2seq_forward.3} parent=0 // pred_fallthru
    _
  %v159 = vld [vmem:[#allocation2] sm:$0xf]
  %v160 = vld [vmem:[#allocation2 + $0x4] sm:$0xf]
  %v161 = vld [vmem:[%s3] sm:$0xf]
  %v162 = vld [vmem:[%s3 + $0x4] sm:$0xf]
  %v163 = vld [vmem:[%s3 + $0x8] sm:$0xf]
  %v164 = vld [vmem:[%s3 + $0xc] sm:$0xf]
  %v165 = vld [vmem:[%s3 + $0x10] sm:$0xf]
  %v166 = vld [vmem:[%s3 + $0x14] sm:$0xf]
  %v167 = vld [vmem:[%s3 + $0x18] sm:$0xf]
  %v168 = vld [vmem:[%s3 + $0x1c] sm:$0xf]
  %v169 = vld [vmem:[%s3 + $0x20] sm:$0xf]
  %v170 = vld [vmem:[%s3 + $0x24] sm:$0xf]
  %v171 = vld [vmem:[%s3 + $0x28] sm:$0xf]
  %v172 = vld [vmem:[%s3 + $0x2c] sm:$0xf]
  %v173 = vld [vmem:[%s3 + $0x30] sm:$0xf]
  %v174 = vld [vmem:[%s3 + $0x34] sm:$0xf]
  %v175 = vld [vmem:[%s3 + $0x38] sm:$0xf]
  %v176 = vld [vmem:[%s3 + $0x3c] sm:$0xf]
  %v177 = vld [vmem:[%s3 + $0x40] sm:$0xf]
  %v178 = vld [vmem:[%s3 + $0x44] sm:$0xf]
  %v179 = vld [vmem:[%s3 + $0x48] sm:$0xf]
  %v180 = vld [vmem:[%s3 + $0x4c] sm:$0xf]
  %v181 = vld [vmem:[%s3 + $0x50] sm:$0xf]
  %v182 = vld [vmem:[%s3 + $0x54] sm:$0xf]
  %v183 = vld [vmem:[%s3 + $0x58] sm:$0xf]
  %v184 = vld [vmem:[%s3 + $0x5c] sm:$0xf]
  %v185 = vld [vmem:[%s3 + $0x60] sm:$0xf]
  %v186 = vld [vmem:[%s3 + $0x64] sm:$0xf]
  %v187 = vld [vmem:[%s3 + $0x68] sm:$0xf]
  %v188 = vld [vmem:[%s3 + $0x6c] sm:$0xf]
  %v189 = vld [vmem:[%s3 + $0x70] sm:$0xf]
  %v190 = vld [vmem:[%s3 + $0x74] sm:$0xf]
  %v191 = vld [vmem:[%s3 + $0x78] sm:$0xf]
  %v192 = vld [vmem:[%s3 + $0x7c] sm:$0xf]
  %v193 = vld [vmem:[%s3 + $0x80] sm:$0xf]
  %v194 = vld [vmem:[%s3 + $0x84] sm:$0xf]
  %v195 = vld [vmem:[%s3 + $0x88] sm:$0xf]
  %v196 = vld [vmem:[%s3 + $0x8c] sm:$0xf]
  %v197 = vld [vmem:[%s3 + $0x90] sm:$0xf]
  %v198 = vld [vmem:[%s3 + $0x94] sm:$0xf]
  %v199 = vld [vmem:[%s3 + $0x98] sm:$0xf]
  %v200 = vld [vmem:[%s3 + $0x9c] sm:$0xf]
  %v201 = vld [vmem:[%s3 + $0xa0] sm:$0xf]
  %v202 = vld [vmem:[%s3 + $0xa4] sm:$0xf]
  %v203 = vld [vmem:[%s3 + $0xa8] sm:$0xf]
  %v204 = vld [vmem:[%s3 + $0xac] sm:$0xf]
  %v205 = vld [vmem:[%s3 + $0xb0] sm:$0xf]
  %v206 = vld [vmem:[%s3 + $0xb4] sm:$0xf]
  %v207 = vld [vmem:[%s3 + $0xb8] sm:$0xf]
  %v208 = vld [vmem:[%s3 + $0xbc] sm:$0xf]
  %v209 = vld [vmem:[%s3 + $0xc0] sm:$0xf]
  %v210 = vld [vmem:[%s3 + $0xc4] sm:$0xf]
  %v211 = vld [vmem:[%s3 + $0xc8] sm:$0xf]
  %v212 = vld [vmem:[%s3 + $0xcc] sm:$0xf]
  %v213 = vld [vmem:[%s3 + $0xd0] sm:$0xf]
  %v214 = vld [vmem:[%s3 + $0xd4] sm:$0xf]
  %v215 = vld [vmem:[%s3 + $0xd8] sm:$0xf]
  %v216 = vld [vmem:[%s3 + $0xdc] sm:$0xf]
  %v217 = vld [vmem:[%s3 + $0xe0] sm:$0xf]
  %v218 = vld [vmem:[%s3 + $0xe4] sm:$0xf]
  %v219 = vld [vmem:[%s3 + $0xe8] sm:$0xf]
  %v220 = vld [vmem:[%s3 + $0xec] sm:$0xf]
  %v221 = vld [vmem:[%s3 + $0xf0] sm:$0xf]
  %v222 = vld [vmem:[%s3 + $0xf4] sm:$0xf]
  %v223 = vld [vmem:[%s3 + $0xf8] sm:$0xf]
  %v224 = vld [vmem:[%s3 + $0xfc] sm:$0xf]
  %v227 = vunpack.c.l.b16 %v159
  %v228 = vunpack.c.l.b16 %v160
  %v229 = vpack.c.b16 %v228, %v227
  %v295 = vunpack.c.l.b16 %v161
  %v296 = vunpack.c.l.b16 %v162
  %v297 = vunpack.c.l.b16 %v163
  %v298 = vunpack.c.l.b16 %v164
  %v299 = vunpack.c.l.b16 %v165
  %v300 = vunpack.c.l.b16 %v166
  %v301 = vunpack.c.l.b16 %v167
  %v302 = vunpack.c.l.b16 %v168
  %v303 = vunpack.c.l.b16 %v169
  %v304 = vunpack.c.l.b16 %v170
  %v305 = vunpack.c.l.b16 %v171
  %v306 = vunpack.c.l.b16 %v172
  %v307 = vunpack.c.l.b16 %v173
  %v308 = vunpack.c.l.b16 %v174
  %v309 = vunpack.c.l.b16 %v175
  %v310 = vunpack.c.l.b16 %v176
  %v311 = vunpack.c.l.b16 %v177
  %v312 = vunpack.c.l.b16 %v178
  %v313 = vunpack.c.l.b16 %v179
  %v314 = vunpack.c.l.b16 %v180
  %v315 = vunpack.c.l.b16 %v181
  %v316 = vunpack.c.l.b16 %v182
  %v317 = vunpack.c.l.b16 %v183
  %v318 = vunpack.c.l.b16 %v184
  %v319 = vunpack.c.l.b16 %v185
  %v320 = vunpack.c.l.b16 %v186
  %v321 = vunpack.c.l.b16 %v187
  %v322 = vunpack.c.l.b16 %v188
  %v323 = vunpack.c.l.b16 %v189
  %v324 = vunpack.c.l.b16 %v190
  %v325 = vunpack.c.l.b16 %v191
  %v326 = vunpack.c.l.b16 %v192
  %v327 = vunpack.c.l.b16 %v193
  %v328 = vunpack.c.l.b16 %v194
  %v329 = vunpack.c.l.b16 %v195
  %v330 = vunpack.c.l.b16 %v196
  %v331 = vunpack.c.l.b16 %v197
  %v332 = vunpack.c.l.b16 %v198
  %v333 = vunpack.c.l.b16 %v199
  %v334 = vunpack.c.l.b16 %v200
  %v335 = vunpack.c.l.b16 %v201
  %v336 = vunpack.c.l.b16 %v202
  %v337 = vunpack.c.l.b16 %v203
  %v338 = vunpack.c.l.b16 %v204
  %v339 = vunpack.c.l.b16 %v205
  %v340 = vunpack.c.l.b16 %v206
  %v341 = vunpack.c.l.b16 %v207
  %v342 = vunpack.c.l.b16 %v208
  %v343 = vunpack.c.l.b16 %v209
  %v344 = vunpack.c.l.b16 %v210
  %v345 = vunpack.c.l.b16 %v211
  %v346 = vunpack.c.l.b16 %v212
  %v347 = vunpack.c.l.b16 %v213
  %v348 = vunpack.c.l.b16 %v214
  %v349 = vunpack.c.l.b16 %v215
  %v350 = vunpack.c.l.b16 %v216
  %v351 = vunpack.c.l.b16 %v217
  %v352 = vunpack.c.l.b16 %v218
  %v353 = vunpack.c.l.b16 %v219
  %v354 = vunpack.c.l.b16 %v220
  %v355 = vunpack.c.l.b16 %v221
  %v356 = vunpack.c.l.b16 %v222
  %v357 = vunpack.c.l.b16 %v223
  %v358 = vunpack.c.l.b16 %v224
  %v359 = vpack.c.b16 %v296, %v295
  %v360 = vpack.c.b16 %v298, %v297
  %v361 = vpack.c.b16 %v300, %v299
  %v362 = vpack.c.b16 %v302, %v301
  %v363 = vpack.c.b16 %v304, %v303
  %v364 = vpack.c.b16 %v306, %v305
  %v365 = vpack.c.b16 %v308, %v307
  %v366 = vpack.c.b16 %v310, %v309
  %v367 = vpack.c.b16 %v312, %v311
  %v368 = vpack.c.b16 %v314, %v313
  %v369 = vpack.c.b16 %v316, %v315
  %v370 = vpack.c.b16 %v318, %v317
  %v371 = vpack.c.b16 %v320, %v319
  %v372 = vpack.c.b16 %v322, %v321
  %v373 = vpack.c.b16 %v324, %v323
  %v374 = vpack.c.b16 %v326, %v325
  %v375 = vpack.c.b16 %v328, %v327
  %v376 = vpack.c.b16 %v330, %v329
  %v377 = vpack.c.b16 %v332, %v331
  %v378 = vpack.c.b16 %v334, %v333
  %v379 = vpack.c.b16 %v336, %v335
  %v380 = vpack.c.b16 %v338, %v337
  %v381 = vpack.c.b16 %v340, %v339
  %v382 = vpack.c.b16 %v342, %v341
  %v383 = vpack.c.b16 %v344, %v343
  %v384 = vpack.c.b16 %v346, %v345
  %v385 = vpack.c.b16 %v348, %v347
  %v386 = vpack.c.b16 %v350, %v349
  %v387 = vpack.c.b16 %v352, %v351
  %v388 = vpack.c.b16 %v354, %v353
  %v389 = vpack.c.b16 %v356, %v355
  %v390 = vpack.c.b16 %v358, %v357
  %423 = vmatprep.subr.bf16.mxu0 0
  %424 = vmatpush1.bf16.xpose.msra.mxu0 %v366
  %425 = vmatprep.subr.bf16.mxu0 0
  %426 = vmatpush1.bf16.xpose.msra.mxu0 %v365
  %427 = vmatprep.subr.bf16.mxu0 0
  %428 = vmatpush1.bf16.xpose.msra.mxu0 %v364
  %429 = vmatprep.subr.bf16.mxu0 0
  %430 = vmatpush1.bf16.xpose.msra.mxu0 %v363
  %431 = vmatprep.subr.bf16.mxu0 0
  %432 = vmatpush1.bf16.xpose.msra.mxu0 %v362
  %433 = vmatprep.subr.bf16.mxu0 0
  %434 = vmatpush1.bf16.xpose.msra.mxu0 %v361
  %435 = vmatprep.subr.bf16.mxu0 0
  %436 = vmatpush1.bf16.xpose.msra.mxu0 %v360
  %437 = vmatprep.subr.bf16.mxu0 0
  %438 = vmatpush1.bf16.xpose.msra.mxu0 %v359
  %439 = vmatprep.subr.bf16.mxu0 0
  %440 = vmatpush2.bf16.xpose.msra.mxu0 %v374
  %441 = vmatprep.subr.bf16.mxu0 0
  %442 = vmatpush2.bf16.xpose.msra.mxu0 %v373
  %443 = vmatprep.subr.bf16.mxu0 0
  %444 = vmatpush2.bf16.xpose.msra.mxu0 %v372
  %445 = vmatprep.subr.bf16.mxu0 0
  %446 = vmatpush2.bf16.xpose.msra.mxu0 %v371
  %447 = vmatprep.subr.bf16.mxu0 0
  %448 = vmatpush2.bf16.xpose.msra.mxu0 %v370
  %449 = vmatprep.subr.bf16.mxu0 0
  %450 = vmatpush2.bf16.xpose.msra.mxu0 %v369
  %451 = vmatprep.subr.bf16.mxu0 0
  %452 = vmatpush2.bf16.xpose.msra.mxu0 %v368
  %453 = vmatprep.subr.bf16.mxu0 0
  %454 = vmatpush2.bf16.xpose.msra.mxu0 %v367
  %455 = vmatprep.mubr.bf16.mxu0 0
  %456 = vmatmul.mubr.bf16.gmra.mxu0 %v229
  %v457 = vpop.f32.mrf.mxu0
  %v458 = vadd.f32 0.0, %v457
  %v459 = vpop.f32.mrf.mxu0
  %v460 = vadd.f32 0.0, %v459
  %v461 = vpop.f32.mrf.mxu0
  %v462 = vadd.f32 0.0, %v461
  %v463 = vpop.f32.mrf.mxu0
  %v464 = vadd.f32 0.0, %v463
  %465 = vdwg.mxu0
  %466 = vmatprep.subr.bf16.mxu0 0
  %467 = vmatpush1.bf16.xpose.msra.mxu0 %v382
  %468 = vmatprep.subr.bf16.mxu0 0
  %469 = vmatpush1.bf16.xpose.msra.mxu0 %v381
  %470 = vmatprep.subr.bf16.mxu0 0
  %471 = vmatpush1.bf16.xpose.msra.mxu0 %v380
  %472 = vmatprep.subr.bf16.mxu0 0
  %473 = vmatpush1.bf16.xpose.msra.mxu0 %v379
  %474 = vmatprep.subr.bf16.mxu0 0
  %475 = vmatpush1.bf16.xpose.msra.mxu0 %v378
  %476 = vmatprep.subr.bf16.mxu0 0
  %477 = vmatpush1.bf16.xpose.msra.mxu0 %v377
  %478 = vmatprep.subr.bf16.mxu0 0
  %479 = vmatpush1.bf16.xpose.msra.mxu0 %v376
  %480 = vmatprep.subr.bf16.mxu0 0
  %481 = vmatpush1.bf16.xpose.msra.mxu0 %v375
  %482 = vmatprep.subr.bf16.mxu0 0
  %483 = vmatpush2.bf16.xpose.msra.mxu0 %v390
  %484 = vmatprep.subr.bf16.mxu0 0
  %485 = vmatpush2.bf16.xpose.msra.mxu0 %v389
  %486 = vmatprep.subr.bf16.mxu0 0
  %487 = vmatpush2.bf16.xpose.msra.mxu0 %v388
  %488 = vmatprep.subr.bf16.mxu0 0
  %489 = vmatpush2.bf16.xpose.msra.mxu0 %v387
  %490 = vmatprep.subr.bf16.mxu0 0
  %491 = vmatpush2.bf16.xpose.msra.mxu0 %v386
  %492 = vmatprep.subr.bf16.mxu0 0
  %493 = vmatpush2.bf16.xpose.msra.mxu0 %v385
  %494 = vmatprep.subr.bf16.mxu0 0
  %495 = vmatpush2.bf16.xpose.msra.mxu0 %v384
  %496 = vmatprep.subr.bf16.mxu0 0
  %497 = vmatpush2.bf16.xpose.msra.mxu0 %v383
  %498 = vmatprep.mubr.bf16.mxu0 0
  %499 = vmatmul.mubr.bf16.gmra.mxu0 %v229
  %v500 = vpop.f32.mrf.mxu0
  %v501 = vadd.f32 0.0, %v500
  %v502 = vpop.f32.mrf.mxu0
  %v503 = vadd.f32 0.0, %v502
  %v504 = vpop.f32.mrf.mxu0
  %v505 = vadd.f32 0.0, %v504
  %v506 = vpop.f32.mrf.mxu0
  %v507 = vadd.f32 0.0, %v506
  %508 = vdwg.mxu0
  %s509 = smul.u32 0, 512
  %v510 = vlaneseq
  %v511 = vand.u32 %v510, 127
  %v512 = vadd.s32 %v511, 128
  %v513 = vadd.s32 %v511, 256
  %v514 = vadd.s32 %v511, 384
  %v515 = vstv %s509
  %v516 = vadd.s32 %v515, %v511
  %v517 = vadd.s32 %v515, %v512
  %v518 = vadd.s32 %v515, %v513
  %v519 = vadd.s32 %v515, %v514
  %vm520 = vcmp.lt.s32.totalorder %v516, 512
  %vm521 = vcmp.lt.s32.totalorder %v517, 512
  %vm522 = vcmp.lt.s32.totalorder %v518, 512
  %vm523 = vcmp.lt.s32.totalorder %v519, 512
  %v524 = vsel %vm520, %v458, -1e+30
  %v525 = vsel %vm521, %v460, -1e+30
  %v526 = vsel %vm522, %v501, -1e+30
  %v527 = vsel %vm523, %v503, -1e+30
  %v528 = vsel %vm520, %v462, -1e+30
  %v529 = vsel %vm521, %v464, -1e+30
  %v530 = vsel %vm522, %v505, -1e+30
  %v531 = vsel %vm523, %v507, -1e+30
  %v532 = vld [vmem:[%s4] sm:$0xff]
  %v533 = vld [vmem:[%s4 + $0x8] sm:$0xff]
  %534 = vset.pattern.permute.xlu0 0
  %535 = vperm.xlu0 %534, %v532
  %v536 = vpop.permute.xlu0 %535
  %537 = vset.pattern.permute.xlu0 0
  %538 = vperm.xlu0 %537, %v533
  %v539 = vpop.permute.xlu0 %538
  %vm540 = vcmp.eq.s32.totalorder %v516, %v536
  %vm541 = vcmp.eq.s32.totalorder %v517, %v536
  %vm542 = vcmp.eq.s32.totalorder %v518, %v536
  %vm543 = vcmp.eq.s32.totalorder %v519, %v536
  %vm544 = vcmp.eq.s32.totalorder %v516, %v539
  %vm545 = vcmp.eq.s32.totalorder %v517, %v539
  %vm546 = vcmp.eq.s32.totalorder %v518, %v539
  %vm547 = vcmp.eq.s32.totalorder %v519, %v539
  %v548 = vsel %vm540, 1, 0
  %v549 = vsel %vm541, 1, 0
  %v550 = vsel %vm542, 1, 0
  %v551 = vsel %vm543, 1, 0
  %v552 = vsel %vm544, 1, 0
  %v553 = vsel %vm545, 1, 0
  %v554 = vsel %vm546, 1, 0
  %v555 = vsel %vm547, 1, 0
  %v556 = vcvt.s32.f32 %v548
  %v557 = vcvt.s32.f32 %v549
  %v558 = vcvt.s32.f32 %v550
  %v559 = vcvt.s32.f32 %v551
  %v560 = vcvt.s32.f32 %v552
  %v561 = vcvt.s32.f32 %v553
  %v562 = vcvt.s32.f32 %v554
  %v563 = vcvt.s32.f32 %v555
  %v564 = vld [vmem:[#allocation5] sm:$0xff]
  %v565 = vld [vmem:[#allocation5 + $0x8] sm:$0xff]
  %v566 = vmul.f32 %v524, %v556
  %v567 = vmul.f32 %v525, %v557
  %v568 = vmul.f32 %v526, %v558
  %v569 = vmul.f32 %v527, %v559
  %v570 = vmul.f32 %v528, %v560
  %v571 = vmul.f32 %v529, %v561
  %v572 = vmul.f32 %v530, %v562
  %v573 = vmul.f32 %v531, %v563
  %v574 = vadd.f32 %v566, %v567
  %v575 = vadd.f32 %v574, %v568
  %v576 = vadd.f32 %v575, %v569
  %577 = vadd.xlane.f32.xlu0 %v576
  %v578 = vpop.xlane.xlu0 %577
  %v579 = vadd.f32 %v570, %v571
  %v580 = vadd.f32 %v579, %v572
  %v581 = vadd.f32 %v580, %v573
  %582 = vadd.xlane.f32.xlu0 %v581
  %v583 = vpop.xlane.xlu0 %582
  %v584 = vadd.f32 %v564, %v578
  %v585 = vadd.f32 %v565, %v583
  %vm586 = vcmask 7168
  %587 = vst.msk [vmem:[#allocation5] sm:$0xff] %vm586, %v584
  %588 = vst.msk [vmem:[#allocation5 + $0x8] sm:$0xff] %vm586, %v585
  %v589 = vld [vmem:[#allocation3] sm:$0xff]
  %v590 = vld [vmem:[#allocation3 + $0x8] sm:$0xff]
  %v591 = vmax.f32 %v524, %v526
  %v592 = vmax.f32 %v525, %v527
  %v593 = vmax.f32 %v591, %v592
  %594 = vmax.xlane.f32.xlu0 %v593
  %v595 = vpop.xlane.xlu0 %594
  %v596 = vmax.f32 %v528, %v530
  %v597 = vmax.f32 %v529, %v531
  %v598 = vmax.f32 %v596, %v597
  %599 = vmax.xlane.f32.xlu0 %v598
  %v600 = vpop.xlane.xlu0 %599
  %v601 = vmax.f32 %v589, %v595
  %v602 = vmax.f32 %v590, %v600
  %v603 = vld [vmem:[#allocation4] sm:$0xff]
  %v604 = vld [vmem:[#allocation4 + $0x8] sm:$0xff]
  %v605 = vsub.f32 %v589, %v601
  %v606 = vsub.f32 %v590, %v602
  %v607 = vmul.f32 %v605, 1.442695
  %v608 = vpow.pop %v607
  %v609 = vmul.f32 %v606, 1.442695
  %v610 = vpow.pop %v609
  %v611 = vmul.f32 %v603, %v608
  %v612 = vmul.f32 %v604, %v610
  %614 = vset.pattern.permute.xlu0 0
  %615 = vperm.xlu0 %614, %v601
  %v616 = vpop.permute.xlu0 %615
  %619 = vset.pattern.permute.xlu0 0
  %620 = vperm.xlu0 %619, %v602
  %v621 = vpop.permute.xlu0 %620
  %v623 = vsub.f32 %v524, %v616
  %v624 = vsub.f32 %v525, %v616
  %v625 = vsub.f32 %v526, %v616
  %v626 = vsub.f32 %v527, %v616
  %v627 = vsub.f32 %v528, %v621
  %v628 = vsub.f32 %v529, %v621
  %v629 = vsub.f32 %v530, %v621
  %v630 = vsub.f32 %v531, %v621
  %v631 = vmul.f32 %v623, 1.442695
  %v632 = vpow.pop %v631
  %v633 = vmul.f32 %v624, 1.442695
  %v634 = vpow.pop %v633
  %v635 = vmul.f32 %v625, 1.442695
  %v636 = vpow.pop %v635
  %v637 = vmul.f32 %v626, 1.442695
  %v638 = vpow.pop %v637
  %v639 = vmul.f32 %v627, 1.442695
  %v640 = vpow.pop %v639
  %v641 = vmul.f32 %v628, 1.442695
  %v642 = vpow.pop %v641
  %v643 = vmul.f32 %v629, 1.442695
  %v644 = vpow.pop %v643
  %v645 = vmul.f32 %v630, 1.442695
  %v646 = vpow.pop %v645
  %v647 = vadd.f32 %v632, %v634
  %v648 = vadd.f32 %v647, %v636
  %v649 = vadd.f32 %v648, %v638
  %650 = vadd.xlane.f32.xlu0 %v649
  %v651 = vpop.xlane.xlu0 %650
  %v652 = vadd.f32 %v640, %v642
  %v653 = vadd.f32 %v652, %v644
  %v654 = vadd.f32 %v653, %v646
  %655 = vadd.xlane.f32.xlu0 %v654
  %v656 = vpop.xlane.xlu0 %655
  %v657 = vadd.f32 %v611, %v651
  %v658 = vadd.f32 %v612, %v656
  %659 = vst.msk [vmem:[#allocation4] sm:$0xff] %vm586, %v657
  %660 = vst.msk [vmem:[#allocation4 + $0x8] sm:$0xff] %vm586, %v658
  %661 = vst.msk [vmem:[#allocation3] sm:$0xff] %vm586, %v601
  %662 = vst.msk [vmem:[#allocation3 + $0x8] sm:$0xff] %vm586, %v602
  // Predicated region
  $region26: #{seq2seq_forward.3} parent=0 // pred_check
    %p663 = pneg %p21
  $region27: #{seq2seq_forward.3} parent=0 // pred_check_branch
    %665 = sbr.rel (%p663) target = $region29
  $region28: #{seq2seq_forward.3} parent=0 // pred_region
    %v666 = vld [vmem:[#allocation3] sm:$0xff]
    %v667 = vld [vmem:[#allocation3 + $0x8] sm:$0xff]
    %v668 = vld [vmem:[#allocation4] sm:$0xff]
    %v669 = vld [vmem:[#allocation4 + $0x8] sm:$0xff]
    %v670 = vlog2.pop %v668
    %v671 = vmul.f32 %v670, 0.6931472
    %v672 = vlog2.pop %v669
    %v673 = vmul.f32 %v672, 0.6931472
    %v674 = vadd.f32 %v666, %v671
    %v675 = vadd.f32 %v667, %v673
    %v676 = vld [vmem:[#allocation5] sm:$0xff]
    %v677 = vld [vmem:[#allocation5 + $0x8] sm:$0xff]
    %v678 = vsub.f32 %v674, %v676
    %v679 = vsub.f32 %v675, %v677
    %680 = vst.msk [vmem:[%s5] sm:$0xff] %vm586, %v678
    %681 = vst.msk [vmem:[%s5 + $0x8] sm:$0xff] %vm586, %v679
  $region29: #{seq2seq_forward.3} parent=0 // pred_fallthru
    _
  // Predicated region
  $region30: #{seq2seq_forward.3} parent=0 // pred_check
    _
  $region31: #{seq2seq_forward.3} parent=0 // pred_check_branch
    %683 = sbr.rel (0) target = $region33
  $region32: #{seq2seq_forward.3} parent=0 // pred_region
    _
  $region33: #{seq2seq_forward.3} parent=0 // pred_fallthru
    _
  // Predicated region
  $region34: #{seq2seq_forward.3} parent=0 // pred_check
    _
  $region35: #{seq2seq_forward.3} parent=0 // pred_check_branch
    %685 = sbr.rel (0) target = $region37
  $region36: #{seq2seq_forward.3} parent=0 // pred_region
    _
  $region37: #{seq2seq_forward.3} parent=0 // pred_fallthru
    _

</llo_original>
